<compile_context>
chip_gen: v6e
topology: v6e:2x2x1
jax: 0.10.0
libtpu: 0.0.40
codegen_flags: <defaults>
</compile_context>

<pallas_src>
import jax
import jax.numpy as jnp
from jax import lax
from jax.experimental import pallas as pl
from jax.experimental.pallas import tpu as pltpu


def _leaky_relu(t):
    # LeakyReLU(0.1): max(t, 0.1*t) == t for t>=0, 0.1*t for t<0.
    return jnp.maximum(t, 0.1 * t)


def _resblock_kernel(xm_ref, xt_ref, xb_ref, w1_ref, b1_ref, w2_ref, b2_ref,
                     o_ref):
    # xm_ref: (1, TH, W, Cin)  main row-tile of x
    # xt_ref: (1, 1,  W, Cin)  row above the tile (clamped at image top)
    # xb_ref: (1, 1,  W, Cin)  row below the tile (clamped at image bottom)
    # w1_ref: (Cin, C0)   b1_ref: (1, C0)
    # w2_ref: (9, C0, C1) b2_ref: (1, C1)
    # o_ref : (1, TH, W, C1)
    TH = xm_ref.shape[1]
    W = xm_ref.shape[2]
    Cin = xm_ref.shape[3]
    C0 = w1_ref.shape[1]
    C1 = w2_ref.shape[2]
    cd = w1_ref.dtype                       # MXU operand dtype (f32 / bf16)

    h = pl.program_id(1)
    nh = pl.num_programs(1)

    w1 = w1_ref[...]
    b1 = b1_ref[0]

    def conv1(x2d):
        # 1x1 conv == channel matmul (BN scale folded into w1), f32 epilogue.
        t = jnp.dot(x2d.astype(cd), w1, preferred_element_type=jnp.float32)
        return _leaky_relu(t + b1)

    # conv1 on the main tile and the two halo rows.
    t_mid = conv1(xm_ref[0].reshape(TH * W, Cin)).reshape(TH, W, C0)
    t_top = conv1(xt_ref[0].reshape(W, Cin)).reshape(1, W, C0)
    t_bot = conv1(xb_ref[0].reshape(W, Cin)).reshape(1, W, C0)
    # At the image border the 3x3 conv sees zero padding, not a clamped row.
    t_top = t_top * (h > 0).astype(jnp.float32)
    t_bot = t_bot * (h < nh - 1).astype(jnp.float32)

    # Assemble conv2 input rows [-1, TH+1) and zero-pad W by 1 on each side.
    t_ext = jnp.concatenate([t_top, t_mid, t_bot], axis=0).astype(cd)
    zcol = jnp.zeros((TH + 2, 1, C0), cd)
    t_pad = jnp.concatenate([zcol, t_ext, zcol], axis=1)   # (TH+2, W+2, C0)

    # conv2: 3x3 conv, padding=1, as 9 per-tap matmuls accumulated in f32.
    acc = jnp.zeros((TH * W, C1), jnp.float32)
    for ky in range(3):
        for kx in range(3):
            tap = t_pad[ky:ky + TH, kx:kx + W, :].reshape(TH * W, C0)
            acc = acc + jnp.dot(tap, w2_ref[ky * 3 + kx],
                                preferred_element_type=jnp.float32)

    out = _leaky_relu(acc + b2_ref[0])
    # Residual add (C1 == Cin): read x again right before the add.
    out = out + xm_ref[0].reshape(TH * W, Cin).astype(jnp.float32)
    o_ref[0] = out.reshape(TH, W, C1).astype(o_ref.dtype)


def _vmem_limit_bytes():
    """Generation-aware VMEM limit: 3/4 of physical (96 MiB on 128 MiB parts,
    48 MiB on v7x's 64 MiB)."""
    try:
        cap = pltpu.get_tpu_info().vmem_capacity_bytes
    except Exception:
        cap = 64 * 1024 * 1024
    return int(cap) * 3 // 4


def _pick_tile_h(H, target=32):
    """Largest divisor of H that is <= target."""
    th = 1
    for d in range(1, min(H, target) + 1):
        if H % d == 0:
            th = d
    return th


def resblock_pallas_nhwc(x_nhwc, w1, b1, w2, b2, tile_h):
    N, H, W, Cin = x_nhwc.shape
    C0 = w1.shape[1]
    C1 = w2.shape[2]
    assert Cin == C1, "residual add requires conv2 out channels == Cin"
    assert H % tile_h == 0, "tile_h must divide H"
    TH = tile_h
    nh = H // TH

    def xm_map(n, h):
        return (n, h, 0, 0)

    def xt_map(n, h):
        # Row above the tile; block size along H is 1, so block index == row.
        return (n, jnp.maximum(h * TH - 1, 0), 0, 0)

    def xb_map(n, h):
        return (n, jnp.minimum((h + 1) * TH, H - 1), 0, 0)

    grid_spec = pltpu.PrefetchScalarGridSpec(
        num_scalar_prefetch=0,
        grid=(N, nh),
        in_specs=[
            pl.BlockSpec((1, TH, W, Cin), xm_map),
            pl.BlockSpec((1, 1, W, Cin), xt_map),
            pl.BlockSpec((1, 1, W, Cin), xb_map),
            pl.BlockSpec((Cin, C0), lambda n, h: (0, 0)),
            pl.BlockSpec((1, C0), lambda n, h: (0, 0)),
            pl.BlockSpec((9, C0, C1), lambda n, h: (0, 0, 0)),
            pl.BlockSpec((1, C1), lambda n, h: (0, 0)),
        ],
        out_specs=pl.BlockSpec((1, TH, W, C1), lambda n, h: (n, h, 0, 0)),
    )
    return pl.pallas_call(
        _resblock_kernel,
        out_shape=jax.ShapeDtypeStruct((N, H, W, C1), x_nhwc.dtype),
        grid_spec=grid_spec,
        compiler_params=pltpu.CompilerParams(
            dimension_semantics=("parallel", "parallel"),
            vmem_limit_bytes=_vmem_limit_bytes()),
    )(x_nhwc, x_nhwc, x_nhwc, w1, b1, w2, b2)


def resblock_forward(x_nchw, params, compute_dtype=jnp.bfloat16, tile_h=None):
    """Wrapper matching PyTorch ResBlock.forward on NCHW input (inference BN).

    compute_dtype: MXU-operand dtype (bf16 default; f32 for strict checks).
    tile_h: row-tile height (default: largest divisor of H <= 32).
    """
    (w1_t, g1, be1, m1, v1, w2_t, g2, be2, m2, v2, eps) = params
    # Fold BN (inference mode): scale into conv weight columns, keep bias.
    s1 = g1 / jnp.sqrt(v1 + eps)
    b1 = be1 - m1 * s1
    s2 = g2 / jnp.sqrt(v2 + eps)
    b2 = be2 - m2 * s2
    # conv1 (C0, Cin, 1, 1) -> (Cin, C0), scaled per output channel.
    w1 = jnp.transpose(w1_t[:, :, 0, 0], (1, 0)) * s1[None, :]
    # conv2 (C1, C0, 3, 3) -> (ky, kx, ci, co) -> (9, C0, C1), scaled per co.
    C1, C0 = w2_t.shape[0], w2_t.shape[1]
    w2 = jnp.transpose(w2_t, (2, 3, 1, 0)).reshape(9, C0, C1) * s2[None, None, :]

    x_nhwc = jnp.transpose(x_nchw, (0, 2, 3, 1))
    H = x_nhwc.shape[1]
    if tile_h is None:
        tile_h = _pick_tile_h(H)
    out = resblock_pallas_nhwc(
        x_nhwc,
        w1.astype(compute_dtype),
        b1.reshape(1, -1).astype(jnp.float32),
        w2.astype(compute_dtype),
        b2.reshape(1, -1).astype(jnp.float32),
        tile_h)
    return jnp.transpose(out, (0, 3, 1, 2))


def resblock_reference(x_nchw, params):
    """Pure-JAX reference (lax.conv) for correctness checking."""
    (w1_t, g1, be1, m1, v1, w2_t, g2, be2, m2, v2, eps) = params
    x = jnp.transpose(x_nchw, (0, 2, 3, 1))

    def conv(x, w_t, pad):
        w = jnp.transpose(w_t, (2, 3, 1, 0))  # HWIO
        return lax.conv_general_dilated(
            x, w, (1, 1), [(pad, pad), (pad, pad)],
            dimension_numbers=('NHWC', 'HWIO', 'NHWC'))

    def bn_lrelu(y, g, b, m, v):
        y = (y - m) / jnp.sqrt(v + eps) * g + b
        return jnp.where(y > 0, y, 0.1 * y)

    out = bn_lrelu(conv(x, w1_t, 0), g1, be1, m1, v1)
    out = bn_lrelu(conv(out, w2_t, 1), g2, be2, m2, v2)
    out = out + x
    return jnp.transpose(out, (0, 3, 1, 2))


if __name__ == "__main__":
    # Small shapes consistent with ResBlock(inplanes=4, planes=[2, 4]).
    N, Cin, H, W = 2, 4, 16, 16
    planes = (2, 4)
    eps = 1e-5

    key = jax.random.PRNGKey(0)
    ks = jax.random.split(key, 11)

    # Deterministic synthetic parameters (torch layouts).
    w1_t = jax.random.normal(ks[0], (planes[0], Cin, 1, 1), jnp.float32) * 0.2
    g1 = jax.random.uniform(ks[1], (planes[0],), jnp.float32, 0.5, 1.5)
    be1 = jax.random.normal(ks[2], (planes[0],), jnp.float32) * 0.1
    m1 = jax.random.normal(ks[3], (planes[0],), jnp.float32) * 0.1
    v1 = jax.random.uniform(ks[4], (planes[0],), jnp.float32, 0.5, 1.5)

    w2_t = jax.random.normal(ks[5], (planes[1], planes[0], 3, 3), jnp.float32) * 0.2
    g2 = jax.random.uniform(ks[6], (planes[1],), jnp.float32, 0.5, 1.5)
    be2 = jax.random.normal(ks[7], (planes[1],), jnp.float32) * 0.1
    m2 = jax.random.normal(ks[8], (planes[1],), jnp.float32) * 0.1
    v2 = jax.random.uniform(ks[9], (planes[1],), jnp.float32, 0.5, 1.5)

    params = (w1_t, g1, be1, m1, v1, w2_t, g2, be2, m2, v2, eps)

    x = jax.random.normal(ks[10], (N, Cin, H, W), jnp.float32)

    ref = jax.block_until_ready(resblock_reference(x, params))

    # f32 MXU operands, tile_h=8 so the cross-tile halo path is exercised:
    # strict check against the lax.conv reference.
    out_f32 = jax.block_until_ready(
        resblock_forward(x, params, compute_dtype=jnp.float32, tile_h=8))
    assert out_f32.shape == (N, planes[1], H, W)
    assert jnp.allclose(out_f32, ref, rtol=1e-4, atol=1e-4), (
        f"f32 max abs err = {jnp.max(jnp.abs(out_f32 - ref))}")

    # bf16 MXU operands (default, v6e/v7x fast path), default tile picking:
    # loose tolerance vs the f32 reference (bf16-rounded inputs/weights).
    out_bf16 = jax.block_until_ready(resblock_forward(x, params))
    assert jnp.allclose(out_bf16, ref, rtol=0.1, atol=0.15), (
        f"bf16 max abs err = {jnp.max(jnp.abs(out_bf16 - ref))}")

    print("KERNEL_OK")
</pallas_src>

<mosaic_0001>
module attributes {stable_mosaic.version = 11 : i64} {
  func.func @_resblock_kernel(%arg0: i32, %arg1: i32, %arg2: memref<1x8x16x4xf32, #tpu.memory_space<vmem>>, %arg3: memref<1x1x16x4xf32, #tpu.memory_space<vmem>>, %arg4: memref<1x1x16x4xf32, #tpu.memory_space<vmem>>, %arg5: memref<4x2xf32, #tpu.memory_space<vmem>>, %arg6: memref<1x2xf32, #tpu.memory_space<vmem>>, %arg7: memref<9x2x4xf32, #tpu.memory_space<vmem>>, %arg8: memref<1x4xf32, #tpu.memory_space<vmem>>, %arg9: memref<1x8x16x4xf32, #tpu.memory_space<vmem>>) attributes {dimension_semantics = [#tpu.dimension_semantics<parallel>, #tpu.dimension_semantics<parallel>], iteration_bounds = array<i64: 2, 2>, scalar_prefetch = 0 : i64, scratch_operands = 0 : i64, tpu.core_type = #tpu.core_type<tc>, window_params = [{transform_indices = @transform_0, window_bounds = array<i64: 1, 8, 16, 4>}, {transform_indices = @transform_1, window_bounds = array<i64: 1, 1, 16, 4>}, {transform_indices = @transform_2, window_bounds = array<i64: 1, 1, 16, 4>}, {pipeline_mode = #tpu.pipeline_mode<synchronous>, transform_indices = @transform_3, window_bounds = array<i64: 4, 2>}, {pipeline_mode = #tpu.pipeline_mode<synchronous>, transform_indices = @transform_4, window_bounds = array<i64: 1, 2>}, {pipeline_mode = #tpu.pipeline_mode<synchronous>, transform_indices = @transform_5, window_bounds = array<i64: 9, 2, 4>}, {pipeline_mode = #tpu.pipeline_mode<synchronous>, transform_indices = @transform_6, window_bounds = array<i64: 1, 4>}, {transform_indices = @transform_7, window_bounds = array<i64: 1, 8, 16, 4>}]} {
    %c0 = arith.constant 0 : index
    %c0_0 = arith.constant 0 : index
    %0 = vector.load %arg5[%c0, %c0_0] : memref<4x2xf32, #tpu.memory_space<vmem>>, vector<4x2xf32>
    %c0_1 = arith.constant 0 : index
    %c0_2 = arith.constant 0 : index
    %1 = vector.load %arg6[%c0_1, %c0_2] : memref<1x2xf32, #tpu.memory_space<vmem>>, vector<1x2xf32>
    %2 = vector.shape_cast %1 : vector<1x2xf32> to vector<2xf32>
    %c0_3 = arith.constant 0 : index
    %c0_4 = arith.constant 0 : index
    %c0_5 = arith.constant 0 : index
    %c0_6 = arith.constant 0 : index
    %3 = vector.load %arg2[%c0_3, %c0_4, %c0_5, %c0_6] : memref<1x8x16x4xf32, #tpu.memory_space<vmem>>, vector<1x8x16x4xf32>
    %4 = vector.shape_cast %3 : vector<1x8x16x4xf32> to vector<8x16x4xf32>
    %5 = vector.shape_cast %4 : vector<8x16x4xf32> to vector<128x4xf32>
    %cst = arith.constant dense<0.000000e+00> : vector<128x2xf32>
    %6 = tpu.matmul %5, %0, %cst {dimension_numbers = #tpu.dot_dimension_numbers<[1], [0], [0], [1], [0, 0, 1, 1], [], []>} : vector<128x4xf32>, vector<4x2xf32>, vector<128x2xf32> -> vector<128x2xf32>
    %7 = vector.shape_cast %2 : vector<2xf32> to vector<1x2xf32>
    %8 = vector.broadcast %7 : vector<1x2xf32> to vector<128x2xf32>
    %9 = arith.addf %6, %8 : vector<128x2xf32>
    %cst_7 = arith.constant 1.000000e-01 : f32
    %10 = vector.broadcast %cst_7 : f32 to vector<128x2xf32>
    %11 = arith.mulf %10, %9 : vector<128x2xf32>
    %12 = arith.maximumf %9, %11 : vector<128x2xf32>
    %13 = vector.shape_cast %12 : vector<128x2xf32> to vector<8x16x2xf32>
    %c0_8 = arith.constant 0 : index
    %c0_9 = arith.constant 0 : index
    %c0_10 = arith.constant 0 : index
    %c0_11 = arith.constant 0 : index
    %14 = vector.load %arg3[%c0_8, %c0_9, %c0_10, %c0_11] : memref<1x1x16x4xf32, #tpu.memory_space<vmem>>, vector<1x1x16x4xf32>
    %15 = vector.shape_cast %14 : vector<1x1x16x4xf32> to vector<1x16x4xf32>
    %16 = vector.shape_cast %15 : vector<1x16x4xf32> to vector<16x4xf32>
    %cst_12 = arith.constant dense<0.000000e+00> : vector<16x2xf32>
    %17 = tpu.matmul %16, %0, %cst_12 {dimension_numbers = #tpu.dot_dimension_numbers<[1], [0], [0], [1], [0, 0, 1, 1], [], []>} : vector<16x4xf32>, vector<4x2xf32>, vector<16x2xf32> -> vector<16x2xf32>
    %18 = vector.shape_cast %2 : vector<2xf32> to vector<1x2xf32>
    %19 = vector.broadcast %18 : vector<1x2xf32> to vector<16x2xf32>
    %20 = arith.addf %17, %19 : vector<16x2xf32>
    %cst_13 = arith.constant 1.000000e-01 : f32
    %21 = vector.broadcast %cst_13 : f32 to vector<16x2xf32>
    %22 = arith.mulf %21, %20 : vector<16x2xf32>
    %23 = arith.maximumf %20, %22 : vector<16x2xf32>
    %24 = vector.shape_cast %23 : vector<16x2xf32> to vector<1x16x2xf32>
    %c0_14 = arith.constant 0 : index
    %c0_15 = arith.constant 0 : index
    %c0_16 = arith.constant 0 : index
    %c0_17 = arith.constant 0 : index
    %25 = vector.load %arg4[%c0_14, %c0_15, %c0_16, %c0_17] : memref<1x1x16x4xf32, #tpu.memory_space<vmem>>, vector<1x1x16x4xf32>
    %26 = vector.shape_cast %25 : vector<1x1x16x4xf32> to vector<1x16x4xf32>
    %27 = vector.shape_cast %26 : vector<1x16x4xf32> to vector<16x4xf32>
    %cst_18 = arith.constant dense<0.000000e+00> : vector<16x2xf32>
    %28 = tpu.matmul %27, %0, %cst_18 {dimension_numbers = #tpu.dot_dimension_numbers<[1], [0], [0], [1], [0, 0, 1, 1], [], []>} : vector<16x4xf32>, vector<4x2xf32>, vector<16x2xf32> -> vector<16x2xf32>
    %29 = vector.shape_cast %2 : vector<2xf32> to vector<1x2xf32>
    %30 = vector.broadcast %29 : vector<1x2xf32> to vector<16x2xf32>
    %31 = arith.addf %28, %30 : vector<16x2xf32>
    %cst_19 = arith.constant 1.000000e-01 : f32
    %32 = vector.broadcast %cst_19 : f32 to vector<16x2xf32>
    %33 = arith.mulf %32, %31 : vector<16x2xf32>
    %34 = arith.maximumf %31, %33 : vector<16x2xf32>
    %35 = vector.shape_cast %34 : vector<16x2xf32> to vector<1x16x2xf32>
    %c0_i32 = arith.constant 0 : i32
    %36 = arith.cmpi sgt, %arg1, %c0_i32 : i32
    %37 = arith.extui %36 : i1 to i32
    %38 = arith.sitofp %37 : i32 to f32
    %39 = vector.broadcast %38 : f32 to vector<1x16x2xf32>
    %40 = arith.mulf %24, %39 : vector<1x16x2xf32>
    %c1_i32 = arith.constant 1 : i32
    %41 = arith.cmpi slt, %arg1, %c1_i32 : i32
    %42 = arith.extui %41 : i1 to i32
    %43 = arith.sitofp %42 : i32 to f32
    %44 = vector.broadcast %43 : f32 to vector<1x16x2xf32>
    %45 = arith.mulf %35, %44 : vector<1x16x2xf32>
    %46 = tpu.concatenate %40, %13, %45 in 0 : vector<1x16x2xf32>, vector<8x16x2xf32>, vector<1x16x2xf32> -> vector<10x16x2xf32>
    %cst_20 = arith.constant 0.000000e+00 : f32
    %47 = vector.broadcast %cst_20 : f32 to vector<10x1x2xf32>
    %48 = tpu.concatenate %47, %46, %47 in 1 : vector<10x1x2xf32>, vector<10x16x2xf32>, vector<10x1x2xf32> -> vector<10x18x2xf32>
    %cst_21 = arith.constant 0.000000e+00 : f32
    %49 = vector.broadcast %cst_21 : f32 to vector<128x4xf32>
    %50 = vector.extract_strided_slice %48 {offsets = [0, 0, 0], sizes = [8, 16, 2], strides = [1, 1, 1]} : vector<10x18x2xf32> to vector<8x16x2xf32>
    %51 = vector.shape_cast %50 : vector<8x16x2xf32> to vector<128x2xf32>
    %c0_22 = arith.constant 0 : index
    %c0_23 = arith.constant 0 : index
    %c0_24 = arith.constant 0 : index
    %52 = vector.load %arg7[%c0_22, %c0_23, %c0_24] : memref<9x2x4xf32, #tpu.memory_space<vmem>>, vector<1x2x4xf32>
    %53 = vector.shape_cast %52 : vector<1x2x4xf32> to vector<2x4xf32>
    %cst_25 = arith.constant dense<0.000000e+00> : vector<128x4xf32>
    %54 = tpu.matmul %51, %53, %cst_25 {dimension_numbers = #tpu.dot_dimension_numbers<[1], [0], [0], [1], [0, 0, 1, 1], [], []>} : vector<128x2xf32>, vector<2x4xf32>, vector<128x4xf32> -> vector<128x4xf32>
    %55 = arith.addf %49, %54 : vector<128x4xf32>
    %56 = vector.extract_strided_slice %48 {offsets = [0, 1, 0], sizes = [8, 16, 2], strides = [1, 1, 1]} : vector<10x18x2xf32> to vector<8x16x2xf32>
    %57 = vector.shape_cast %56 : vector<8x16x2xf32> to vector<128x2xf32>
    %c1 = arith.constant 1 : index
    %c0_26 = arith.constant 0 : index
    %c0_27 = arith.constant 0 : index
    %58 = vector.load %arg7[%c1, %c0_26, %c0_27] : memref<9x2x4xf32, #tpu.memory_space<vmem>>, vector<1x2x4xf32>
    %59 = vector.shape_cast %58 : vector<1x2x4xf32> to vector<2x4xf32>
    %cst_28 = arith.constant dense<0.000000e+00> : vector<128x4xf32>
    %60 = tpu.matmul %57, %59, %cst_28 {dimension_numbers = #tpu.dot_dimension_numbers<[1], [0], [0], [1], [0, 0, 1, 1], [], []>} : vector<128x2xf32>, vector<2x4xf32>, vector<128x4xf32> -> vector<128x4xf32>
    %61 = arith.addf %55, %60 : vector<128x4xf32>
    %62 = vector.extract_strided_slice %48 {offsets = [0, 2, 0], sizes = [8, 16, 2], strides = [1, 1, 1]} : vector<10x18x2xf32> to vector<8x16x2xf32>
    %63 = vector.shape_cast %62 : vector<8x16x2xf32> to vector<128x2xf32>
    %c2 = arith.constant 2 : index
    %c0_29 = arith.constant 0 : index
    %c0_30 = arith.constant 0 : index
    %64 = vector.load %arg7[%c2, %c0_29, %c0_30] : memref<9x2x4xf32, #tpu.memory_space<vmem>>, vector<1x2x4xf32>
    %65 = vector.shape_cast %64 : vector<1x2x4xf32> to vector<2x4xf32>
    %cst_31 = arith.constant dense<0.000000e+00> : vector<128x4xf32>
    %66 = tpu.matmul %63, %65, %cst_31 {dimension_numbers = #tpu.dot_dimension_numbers<[1], [0], [0], [1], [0, 0, 1, 1], [], []>} : vector<128x2xf32>, vector<2x4xf32>, vector<128x4xf32> -> vector<128x4xf32>
    %67 = arith.addf %61, %66 : vector<128x4xf32>
    %68 = vector.extract_strided_slice %48 {offsets = [1, 0, 0], sizes = [8, 16, 2], strides = [1, 1, 1]} : vector<10x18x2xf32> to vector<8x16x2xf32>
    %69 = vector.shape_cast %68 : vector<8x16x2xf32> to vector<128x2xf32>
    %c3 = arith.constant 3 : index
    %c0_32 = arith.constant 0 : index
    %c0_33 = arith.constant 0 : index
    %70 = vector.load %arg7[%c3, %c0_32, %c0_33] : memref<9x2x4xf32, #tpu.memory_space<vmem>>, vector<1x2x4xf32>
    %71 = vector.shape_cast %70 : vector<1x2x4xf32> to vector<2x4xf32>
    %cst_34 = arith.constant dense<0.000000e+00> : vector<128x4xf32>
    %72 = tpu.matmul %69, %71, %cst_34 {dimension_numbers = #tpu.dot_dimension_numbers<[1], [0], [0], [1], [0, 0, 1, 1], [], []>} : vector<128x2xf32>, vector<2x4xf32>, vector<128x4xf32> -> vector<128x4xf32>
    %73 = arith.addf %67, %72 : vector<128x4xf32>
    %74 = vector.extract_strided_slice %48 {offsets = [1, 1, 0], sizes = [8, 16, 2], strides = [1, 1, 1]} : vector<10x18x2xf32> to vector<8x16x2xf32>
    %75 = vector.shape_cast %74 : vector<8x16x2xf32> to vector<128x2xf32>
    %c4 = arith.constant 4 : index
    %c0_35 = arith.constant 0 : index
    %c0_36 = arith.constant 0 : index
    %76 = vector.load %arg7[%c4, %c0_35, %c0_36] : memref<9x2x4xf32, #tpu.memory_space<vmem>>, vector<1x2x4xf32>
    %77 = vector.shape_cast %76 : vector<1x2x4xf32> to vector<2x4xf32>
    %cst_37 = arith.constant dense<0.000000e+00> : vector<128x4xf32>
    %78 = tpu.matmul %75, %77, %cst_37 {dimension_numbers = #tpu.dot_dimension_numbers<[1], [0], [0], [1], [0, 0, 1, 1], [], []>} : vector<128x2xf32>, vector<2x4xf32>, vector<128x4xf32> -> vector<128x4xf32>
    %79 = arith.addf %73, %78 : vector<128x4xf32>
    %80 = vector.extract_strided_slice %48 {offsets = [1, 2, 0], sizes = [8, 16, 2], strides = [1, 1, 1]} : vector<10x18x2xf32> to vector<8x16x2xf32>
    %81 = vector.shape_cast %80 : vector<8x16x2xf32> to vector<128x2xf32>
    %c5 = arith.constant 5 : index
    %c0_38 = arith.constant 0 : index
    %c0_39 = arith.constant 0 : index
    %82 = vector.load %arg7[%c5, %c0_38, %c0_39] : memref<9x2x4xf32, #tpu.memory_space<vmem>>, vector<1x2x4xf32>
    %83 = vector.shape_cast %82 : vector<1x2x4xf32> to vector<2x4xf32>
    %cst_40 = arith.constant dense<0.000000e+00> : vector<128x4xf32>
    %84 = tpu.matmul %81, %83, %cst_40 {dimension_numbers = #tpu.dot_dimension_numbers<[1], [0], [0], [1], [0, 0, 1, 1], [], []>} : vector<128x2xf32>, vector<2x4xf32>, vector<128x4xf32> -> vector<128x4xf32>
    %85 = arith.addf %79, %84 : vector<128x4xf32>
    %86 = vector.extract_strided_slice %48 {offsets = [2, 0, 0], sizes = [8, 16, 2], strides = [1, 1, 1]} : vector<10x18x2xf32> to vector<8x16x2xf32>
    %87 = vector.shape_cast %86 : vector<8x16x2xf32> to vector<128x2xf32>
    %c6 = arith.constant 6 : index
    %c0_41 = arith.constant 0 : index
    %c0_42 = arith.constant 0 : index
    %88 = vector.load %arg7[%c6, %c0_41, %c0_42] : memref<9x2x4xf32, #tpu.memory_space<vmem>>, vector<1x2x4xf32>
    %89 = vector.shape_cast %88 : vector<1x2x4xf32> to vector<2x4xf32>
    %cst_43 = arith.constant dense<0.000000e+00> : vector<128x4xf32>
    %90 = tpu.matmul %87, %89, %cst_43 {dimension_numbers = #tpu.dot_dimension_numbers<[1], [0], [0], [1], [0, 0, 1, 1], [], []>} : vector<128x2xf32>, vector<2x4xf32>, vector<128x4xf32> -> vector<128x4xf32>
    %91 = arith.addf %85, %90 : vector<128x4xf32>
    %92 = vector.extract_strided_slice %48 {offsets = [2, 1, 0], sizes = [8, 16, 2], strides = [1, 1, 1]} : vector<10x18x2xf32> to vector<8x16x2xf32>
    %93 = vector.shape_cast %92 : vector<8x16x2xf32> to vector<128x2xf32>
    %c7 = arith.constant 7 : index
    %c0_44 = arith.constant 0 : index
    %c0_45 = arith.constant 0 : index
    %94 = vector.load %arg7[%c7, %c0_44, %c0_45] : memref<9x2x4xf32, #tpu.memory_space<vmem>>, vector<1x2x4xf32>
    %95 = vector.shape_cast %94 : vector<1x2x4xf32> to vector<2x4xf32>
    %cst_46 = arith.constant dense<0.000000e+00> : vector<128x4xf32>
    %96 = tpu.matmul %93, %95, %cst_46 {dimension_numbers = #tpu.dot_dimension_numbers<[1], [0], [0], [1], [0, 0, 1, 1], [], []>} : vector<128x2xf32>, vector<2x4xf32>, vector<128x4xf32> -> vector<128x4xf32>
    %97 = arith.addf %91, %96 : vector<128x4xf32>
    %98 = vector.extract_strided_slice %48 {offsets = [2, 2, 0], sizes = [8, 16, 2], strides = [1, 1, 1]} : vector<10x18x2xf32> to vector<8x16x2xf32>
    %99 = vector.shape_cast %98 : vector<8x16x2xf32> to vector<128x2xf32>
    %c8 = arith.constant 8 : index
    %c0_47 = arith.constant 0 : index
    %c0_48 = arith.constant 0 : index
    %100 = vector.load %arg7[%c8, %c0_47, %c0_48] : memref<9x2x4xf32, #tpu.memory_space<vmem>>, vector<1x2x4xf32>
    %101 = vector.shape_cast %100 : vector<1x2x4xf32> to vector<2x4xf32>
    %cst_49 = arith.constant dense<0.000000e+00> : vector<128x4xf32>
    %102 = tpu.matmul %99, %101, %cst_49 {dimension_numbers = #tpu.dot_dimension_numbers<[1], [0], [0], [1], [0, 0, 1, 1], [], []>} : vector<128x2xf32>, vector<2x4xf32>, vector<128x4xf32> -> vector<128x4xf32>
    %103 = arith.addf %97, %102 : vector<128x4xf32>
    %c0_50 = arith.constant 0 : index
    %c0_51 = arith.constant 0 : index
    %104 = vector.load %arg8[%c0_50, %c0_51] : memref<1x4xf32, #tpu.memory_space<vmem>>, vector<1x4xf32>
    %105 = vector.shape_cast %104 : vector<1x4xf32> to vector<4xf32>
    %106 = vector.shape_cast %105 : vector<4xf32> to vector<1x4xf32>
    %107 = vector.broadcast %106 : vector<1x4xf32> to vector<128x4xf32>
    %108 = arith.addf %103, %107 : vector<128x4xf32>
    %cst_52 = arith.constant 1.000000e-01 : f32
    %109 = vector.broadcast %cst_52 : f32 to vector<128x4xf32>
    %110 = arith.mulf %109, %108 : vector<128x4xf32>
    %111 = arith.maximumf %108, %110 : vector<128x4xf32>
    %c0_53 = arith.constant 0 : index
    %c0_54 = arith.constant 0 : index
    %c0_55 = arith.constant 0 : index
    %c0_56 = arith.constant 0 : index
    %112 = vector.load %arg2[%c0_53, %c0_54, %c0_55, %c0_56] : memref<1x8x16x4xf32, #tpu.memory_space<vmem>>, vector<1x8x16x4xf32>
    %113 = vector.shape_cast %112 : vector<1x8x16x4xf32> to vector<8x16x4xf32>
    %114 = vector.shape_cast %113 : vector<8x16x4xf32> to vector<128x4xf32>
    %115 = arith.addf %111, %114 : vector<128x4xf32>
    %116 = vector.shape_cast %115 : vector<128x4xf32> to vector<8x16x4xf32>
    %c0_57 = arith.constant 0 : index
    %c0_58 = arith.constant 0 : index
    %c0_59 = arith.constant 0 : index
    %c0_60 = arith.constant 0 : index
    %117 = vector.load %arg9[%c0_57, %c0_58, %c0_59, %c0_60] : memref<1x8x16x4xf32, #tpu.memory_space<vmem>>, vector<1x8x16x4xf32>
    %118 = vector.shape_cast %117 : vector<1x8x16x4xf32> to vector<8x16x4xf32>
    %119 = vector.shape_cast %116 : vector<8x16x4xf32> to vector<1x8x16x4xf32>
    tpu.vector_store %arg9[%c0_57, %c0_58, %c0_59, %c0_60], %119 {strides = array<i32>} : memref<1x8x16x4xf32, #tpu.memory_space<vmem>>, vector<1x8x16x4xf32>,
    return
  }
  func.func @transform_0(%arg0: i32, %arg1: i32) -> (i32, i32, i32, i32) {
    %c0_i32 = arith.constant 0 : i32
    %c0_i32_0 = arith.constant 0 : i32
    %c0_i32_1 = arith.constant 0 : i32
    return %arg0, %arg1, %c0_i32, %c0_i32_0 : i32, i32, i32, i32
  }
  func.func @transform_1(%arg0: i32, %arg1: i32) -> (i32, i32, i32, i32) {
    %c8_i32 = arith.constant 8 : i32
    %0 = arith.muli %arg1, %c8_i32 : i32
    %c1_i32 = arith.constant 1 : i32
    %1 = arith.subi %0, %c1_i32 : i32
    %c0_i32 = arith.constant 0 : i32
    %2 = arith.maxsi %1, %c0_i32 : i32
    %c0_i32_0 = arith.constant 0 : i32
    %c0_i32_1 = arith.constant 0 : i32
    %c0_i32_2 = arith.constant 0 : i32
    return %arg0, %2, %c0_i32_0, %c0_i32_1 : i32, i32, i32, i32
  }
  func.func @transform_2(%arg0: i32, %arg1: i32) -> (i32, i32, i32, i32) {
    %c1_i32 = arith.constant 1 : i32
    %0 = arith.addi %arg1, %c1_i32 : i32
    %c8_i32 = arith.constant 8 : i32
    %1 = arith.muli %0, %c8_i32 : i32
    %c15_i32 = arith.constant 15 : i32
    %2 = arith.minsi %1, %c15_i32 : i32
    %c0_i32 = arith.constant 0 : i32
    %c0_i32_0 = arith.constant 0 : i32
    %c0_i32_1 = arith.constant 0 : i32
    return %arg0, %2, %c0_i32, %c0_i32_0 : i32, i32, i32, i32
  }
  func.func @transform_3(%arg0: i32, %arg1: i32) -> (i32, i32) {
    %c0_i32 = arith.constant 0 : i32
    %c0_i32_0 = arith.constant 0 : i32
    %c0_i32_1 = arith.constant 0 : i32
    return %c0_i32, %c0_i32_0 : i32, i32
  }
  func.func @transform_4(%arg0: i32, %arg1: i32) -> (i32, i32) {
    %c0_i32 = arith.constant 0 : i32
    %c0_i32_0 = arith.constant 0 : i32
    %c0_i32_1 = arith.constant 0 : i32
    return %c0_i32, %c0_i32_0 : i32, i32
  }
  func.func @transform_5(%arg0: i32, %arg1: i32) -> (i32, i32, i32) {
    %c0_i32 = arith.constant 0 : i32
    %c0_i32_0 = arith.constant 0 : i32
    %c0_i32_1 = arith.constant 0 : i32
    %c0_i32_2 = arith.constant 0 : i32
    return %c0_i32, %c0_i32_0, %c0_i32_1 : i32, i32, i32
  }
  func.func @transform_6(%arg0: i32, %arg1: i32) -> (i32, i32) {
    %c0_i32 = arith.constant 0 : i32
    %c0_i32_0 = arith.constant 0 : i32
    %c0_i32_1 = arith.constant 0 : i32
    return %c0_i32, %c0_i32_0 : i32, i32
  }
  func.func @transform_7(%arg0: i32, %arg1: i32) -> (i32, i32, i32, i32) {
    %c0_i32 = arith.constant 0 : i32
    %c0_i32_0 = arith.constant 0 : i32
    %c0_i32_1 = arith.constant 0 : i32
    return %arg0, %arg1, %c0_i32, %c0_i32_0 : i32, i32, i32, i32
  }
}

</mosaic_0001>

<llo_original>
// kernel: tpu_custom_call.1
$region0: #{tpu_custom_call.1}
  #allocation0 [shape = 'u32[]', space=smem, size = 0x4, offset = 0x4, fixed_abs, tag = 'smem constant byte address 0x4 - core index']
  #allocation1 [shape = 'u32[144,128]{1,0:T(1,128)}', space=vmem, size = 0x12000, scoped, tag = 'internal scratch']
  %s0 = inlined_call_operand.vmem [shape: f32[2,16,16,4], index: 0, kind: input, shape index: {}]
  %s1 = inlined_call_operand.vmem [shape: f32[2,16,16,4], index: 1, kind: input, shape index: {}]
  %s2 = inlined_call_operand.vmem [shape: f32[2,16,16,4], index: 2, kind: input, shape index: {}]
  %s3 = inlined_call_operand.vmem [shape: f32[4,2], index: 3, kind: input, shape index: {}]
  %s4 = inlined_call_operand.vmem [shape: f32[1,2], index: 4, kind: input, shape index: {}]
  %s5 = inlined_call_operand.vmem [shape: f32[9,2,4], index: 5, kind: input, shape index: {}]
  %s6 = inlined_call_operand.vmem [shape: f32[1,4], index: 6, kind: input, shape index: {}]
  %s7 = inlined_call_operand.vmem [shape: f32[2,16,16,4], index: 7, kind: output, shape index: {}]
  %s8 = sld [smem:[#allocation0]]
  $region61: #{tpu_custom_call.1} parent=0
    _
  %s10 = ssub.s32 1, %s8
  %s11 = scalar_select 0, %s10, %s8
  loop: start=0, step=1, limit=6
  $region2: #{tpu_custom_call.1} parent=0 // loop_pre_header
    _
  $region3: #{tpu_custom_call.1} parent=0 // loop_header
    %s13 = sphi 0, %s17
    %p14 = scmp.ge.s32.totalorder %s13, 6
    %s20 = sphi 0, %s32
    %s21 = sphi 0, %s28
    %s22 = sphi 0, %s20
    %s23 = sphi 0, %s21
    %s24 = sphi 0, %s22
    %s25 = sphi 0, %s23
    %s37 = sphi 0, %s39
    %s40 = sphi 0, %s37
    %s41 = sphi 0, %s40
    %s57 = sphi 0, %s41
    %s73 = sphi 0, %s75
    %s76 = sphi 0, %s73
    %s77 = sphi 0, %s76
    %s93 = sphi 0, %s77
    %s109 = sphi 0, %s111
    %s112 = sphi 0, %s109
    %s113 = sphi 0, %s112
    %s129 = sphi 0, %s113
    %s133 = sphi 0, %s133
    %s135 = sphi 0, %s133
    %s136 = sphi 0, %s135
    %s150 = sphi 0, %s136
    %s154 = sphi 0, %s154
    %s156 = sphi 0, %s154
    %s157 = sphi 0, %s156
    %s171 = sphi 0, %s157
    %s175 = sphi 0, %s175
    %s177 = sphi 0, %s175
    %s178 = sphi 0, %s177
    %s192 = sphi 0, %s178
    %s196 = sphi 0, %s196
    %s198 = sphi 0, %s196
    %s199 = sphi 0, %s198
    %s213 = sphi 0, %s199
    %s221 = sphi 0, %s223
    %s224 = sphi 0, %s221
    %s225 = sphi 0, %s224
    %s241 = sphi 0, %s225
  $region4: #{tpu_custom_call.1} parent=0 // loop_header_branch
    %16 = sbr.rel (%p14) target = $region8
  $region5: #{tpu_custom_call.1} parent=0 // loop_body
    %s18 = ssub.s32 %s13, 1
    %s19 = ssub.s32 %s13, 2
    %s26 = sadd.s32 1, %s21
    %p27 = scmp.ge.s32.totalorder %s26, 2
    %s28 = scalar_select %p27, 0, %s26
    %s29 = sadd.s32 1, %s20
    %s30 = scalar_select %p27, %s29, %s20
    %p31 = scmp.ge.s32.totalorder %s30, 2
    %s32 = scalar_select %p31, 0, %s30
    %s33 = ssub.s32 %s20, %s32
    %s34 = ssub.s32 %s21, %s28
    %s35 = sor.u32 %s33, %s34
    %p36 = scmp.eq.s32.totalorder %s35, 0
    %s38 = sadd.s32 %s37, 1
    %s39 = scalar_select %p36, %s37, %s38
    %p42 = pneg %p36
    %p43 = scmp.eq.s32.totalorder %s13, 3
    %p44 = por %p42, %p43
    %p45 = scmp.ne.s32.totalorder %s37, %s40
    %p46 = scmp.eq.s32.totalorder %s13, 0
    %p47 = por %p45, %p46
    %p48 = scmp.ne.s32.totalorder %s37, %s40
    %p49 = scmp.eq.s32.totalorder %s18, 3
    %p50 = por %p48, %p49
    %p51 = scmp.ne.s32.totalorder %s40, %s41
    %p52 = scmp.eq.s32.totalorder %s18, 0
    %p53 = por %p51, %p52
    %p54 = scmp.ne.s32.totalorder %s40, %s41
    %p55 = scmp.eq.s32.totalorder %s19, 3
    %p56 = por %p54, %p55
    %p58 = scmp.ne.s32.totalorder %s41, %s57
    %p59 = scmp.eq.s32.totalorder %s19, 0
    %p60 = por %p58, %p59
    %s61 = smul.u32 %s21, 8
    %s62 = ssub.s32 %s61, 1
    %p63 = scmp.gt.s32.totalorder %s62, 0
    %s64 = scalar_select %p63, %s62, 0
    %s65 = smul.u32 %s28, 8
    %s66 = ssub.s32 %s65, 1
    %p67 = scmp.gt.s32.totalorder %s66, 0
    %s68 = scalar_select %p67, %s66, 0
    %s69 = ssub.s32 %s20, %s32
    %s70 = ssub.s32 %s64, %s68
    %s71 = sor.u32 %s69, %s70
    %p72 = scmp.eq.s32.totalorder %s71, 0
    %s74 = sadd.s32 %s73, 1
    %s75 = scalar_select %p72, %s73, %s74
    %p78 = pneg %p72
    %p79 = scmp.eq.s32.totalorder %s13, 3
    %p80 = por %p78, %p79
    %p81 = scmp.ne.s32.totalorder %s73, %s76
    %p82 = scmp.eq.s32.totalorder %s13, 0
    %p83 = por %p81, %p82
    %p84 = scmp.ne.s32.totalorder %s73, %s76
    %p85 = scmp.eq.s32.totalorder %s18, 3
    %p86 = por %p84, %p85
    %p87 = scmp.ne.s32.totalorder %s76, %s77
    %p88 = scmp.eq.s32.totalorder %s18, 0
    %p89 = por %p87, %p88
    %p90 = scmp.ne.s32.totalorder %s76, %s77
    %p91 = scmp.eq.s32.totalorder %s19, 3
    %p92 = por %p90, %p91
    %p94 = scmp.ne.s32.totalorder %s77, %s93
    %p95 = scmp.eq.s32.totalorder %s19, 0
    %p96 = por %p94, %p95
    %s97 = sadd.s32 %s21, 1
    %s98 = smul.u32 %s97, 8
    %p99 = scmp.lt.s32.totalorder %s98, 15
    %s100 = scalar_select %p99, %s98, 15
    %s101 = sadd.s32 %s28, 1
    %s102 = smul.u32 %s101, 8
    %p103 = scmp.lt.s32.totalorder %s102, 15
    %s104 = scalar_select %p103, %s102, 15
    %s105 = ssub.s32 %s20, %s32
    %s106 = ssub.s32 %s100, %s104
    %s107 = sor.u32 %s105, %s106
    %p108 = scmp.eq.s32.totalorder %s107, 0
    %s110 = sadd.s32 %s109, 1
    %s111 = scalar_select %p108, %s109, %s110
    %p114 = pneg %p108
    %p115 = scmp.eq.s32.totalorder %s13, 3
    %p116 = por %p114, %p115
    %p117 = scmp.ne.s32.totalorder %s109, %s112
    %p118 = scmp.eq.s32.totalorder %s13, 0
    %p119 = por %p117, %p118
    %p120 = scmp.ne.s32.totalorder %s109, %s112
    %p121 = scmp.eq.s32.totalorder %s18, 3
    %p122 = por %p120, %p121
    %p123 = scmp.ne.s32.totalorder %s112, %s113
    %p124 = scmp.eq.s32.totalorder %s18, 0
    %p125 = por %p123, %p124
    %p126 = scmp.ne.s32.totalorder %s112, %s113
    %p127 = scmp.eq.s32.totalorder %s19, 3
    %p128 = por %p126, %p127
    %p130 = scmp.ne.s32.totalorder %s113, %s129
    %p131 = scmp.eq.s32.totalorder %s19, 0
    %p132 = por %p130, %p131
    %s134 = sadd.s32 %s133, 1
    %p137 = scmp.eq.s32.totalorder %s13, 3
    %p138 = scmp.ne.s32.totalorder %s133, %s135
    %p139 = scmp.eq.s32.totalorder %s13, 0
    %p140 = por %p138, %p139
    %p141 = scmp.ne.s32.totalorder %s133, %s135
    %p142 = scmp.eq.s32.totalorder %s18, 3
    %p143 = por %p141, %p142
    %p144 = scmp.ne.s32.totalorder %s135, %s136
    %p145 = scmp.eq.s32.totalorder %s18, 0
    %p146 = por %p144, %p145
    %p147 = scmp.ne.s32.totalorder %s135, %s136
    %p148 = scmp.eq.s32.totalorder %s19, 3
    %p149 = por %p147, %p148
    %p151 = scmp.ne.s32.totalorder %s136, %s150
    %p152 = scmp.eq.s32.totalorder %s19, 0
    %p153 = por %p151, %p152
    %s155 = sadd.s32 %s154, 1
    %p158 = scmp.eq.s32.totalorder %s13, 3
    %p159 = scmp.ne.s32.totalorder %s154, %s156
    %p160 = scmp.eq.s32.totalorder %s13, 0
    %p161 = por %p159, %p160
    %p162 = scmp.ne.s32.totalorder %s154, %s156
    %p163 = scmp.eq.s32.totalorder %s18, 3
    %p164 = por %p162, %p163
    %p165 = scmp.ne.s32.totalorder %s156, %s157
    %p166 = scmp.eq.s32.totalorder %s18, 0
    %p167 = por %p165, %p166
    %p168 = scmp.ne.s32.totalorder %s156, %s157
    %p169 = scmp.eq.s32.totalorder %s19, 3
    %p170 = por %p168, %p169
    %p172 = scmp.ne.s32.totalorder %s157, %s171
    %p173 = scmp.eq.s32.totalorder %s19, 0
    %p174 = por %p172, %p173
    %s176 = sadd.s32 %s175, 1
    %p179 = scmp.eq.s32.totalorder %s13, 3
    %p180 = scmp.ne.s32.totalorder %s175, %s177
    %p181 = scmp.eq.s32.totalorder %s13, 0
    %p182 = por %p180, %p181
    %p183 = scmp.ne.s32.totalorder %s175, %s177
    %p184 = scmp.eq.s32.totalorder %s18, 3
    %p185 = por %p183, %p184
    %p186 = scmp.ne.s32.totalorder %s177, %s178
    %p187 = scmp.eq.s32.totalorder %s18, 0
    %p188 = por %p186, %p187
    %p189 = scmp.ne.s32.totalorder %s177, %s178
    %p190 = scmp.eq.s32.totalorder %s19, 3
    %p191 = por %p189, %p190
    %p193 = scmp.ne.s32.totalorder %s178, %s192
    %p194 = scmp.eq.s32.totalorder %s19, 0
    %p195 = por %p193, %p194
    %s197 = sadd.s32 %s196, 1
    %p200 = scmp.eq.s32.totalorder %s13, 3
    %p201 = scmp.ne.s32.totalorder %s196, %s198
    %p202 = scmp.eq.s32.totalorder %s13, 0
    %p203 = por %p201, %p202
    %p204 = scmp.ne.s32.totalorder %s196, %s198
    %p205 = scmp.eq.s32.totalorder %s18, 3
    %p206 = por %p204, %p205
    %p207 = scmp.ne.s32.totalorder %s198, %s199
    %p208 = scmp.eq.s32.totalorder %s18, 0
    %p209 = por %p207, %p208
    %p210 = scmp.ne.s32.totalorder %s198, %s199
    %p211 = scmp.eq.s32.totalorder %s19, 3
    %p212 = por %p210, %p211
    %p214 = scmp.ne.s32.totalorder %s199, %s213
    %p215 = scmp.eq.s32.totalorder %s19, 0
    %p216 = por %p214, %p215
    %s217 = ssub.s32 %s20, %s32
    %s218 = ssub.s32 %s21, %s28
    %s219 = sor.u32 %s217, %s218
    %p220 = scmp.eq.s32.totalorder %s219, 0
    %s222 = sadd.s32 %s221, 1
    %s223 = scalar_select %p220, %s221, %s222
    %p226 = pneg %p220
    %p227 = scmp.eq.s32.totalorder %s13, 3
    %p228 = por %p226, %p227
    %p229 = scmp.ne.s32.totalorder %s221, %s224
    %p230 = scmp.eq.s32.totalorder %s13, 0
    %p231 = por %p229, %p230
    %p232 = scmp.ne.s32.totalorder %s221, %s224
    %p233 = scmp.eq.s32.totalorder %s18, 3
    %p234 = por %p232, %p233
    %p235 = scmp.ne.s32.totalorder %s224, %s225
    %p236 = scmp.eq.s32.totalorder %s18, 0
    %p237 = por %p235, %p236
    %p238 = scmp.ne.s32.totalorder %s224, %s225
    %p239 = scmp.eq.s32.totalorder %s19, 3
    %p240 = por %p238, %p239
    %p242 = scmp.ne.s32.totalorder %s225, %s241
    %p243 = scmp.eq.s32.totalorder %s19, 0
    %p244 = por %p242, %p243
    %p245 = scmp.le.s32.totalorder 1, %s13
    %p246 = scmp.lt.s32.totalorder %s13, 5
    %p247 = pnand %p245, %p246
    %p248 = pneg %p247
    // Predicated region
    $region9: #{tpu_custom_call.1} parent=5 // pred_check
      _
    $region10: #{tpu_custom_call.1} parent=5 // pred_check_branch
      %250 = sbr.rel (%p247) target = $region12
    $region11: #{tpu_custom_call.1} parent=5 // pred_region
      %s251 = ssub.s32 %s13, 1
      // Predicated region
      $region13: #{tpu_custom_call.1} parent=11 // pred_check
        %p252 = pneg %p146
      $region14: #{tpu_custom_call.1} parent=11 // pred_check_branch
        %254 = sbr.rel (%p252) target = $region16
      $region15: #{tpu_custom_call.1} parent=11 // pred_region
        _
      $region16: #{tpu_custom_call.1} parent=11 // pred_fallthru
        _
      // Predicated region
      $region17: #{tpu_custom_call.1} parent=11 // pred_check
        %p255 = pneg %p167
      $region18: #{tpu_custom_call.1} parent=11 // pred_check_branch
        %257 = sbr.rel (%p255) target = $region20
      $region19: #{tpu_custom_call.1} parent=11 // pred_region
        _
      $region20: #{tpu_custom_call.1} parent=11 // pred_fallthru
        _
      // Predicated region
      $region21: #{tpu_custom_call.1} parent=11 // pred_check
        %p258 = pneg %p188
      $region22: #{tpu_custom_call.1} parent=11 // pred_check_branch
        %260 = sbr.rel (%p258) target = $region24
      $region23: #{tpu_custom_call.1} parent=11 // pred_region
        _
      $region24: #{tpu_custom_call.1} parent=11 // pred_fallthru
        _
      // Predicated region
      $region25: #{tpu_custom_call.1} parent=11 // pred_check
        %p261 = pneg %p209
      $region26: #{tpu_custom_call.1} parent=11 // pred_check_branch
        %263 = sbr.rel (%p261) target = $region28
      $region27: #{tpu_custom_call.1} parent=11 // pred_region
        _
      $region28: #{tpu_custom_call.1} parent=11 // pred_fallthru
        _
    $region12: #{tpu_custom_call.1} parent=5 // pred_fallthru
      _
    %p264 = scmp.lt.s32.totalorder %s13, 4
    // Predicated region
    $region29: #{tpu_custom_call.1} parent=5 // pred_check
      %p265 = pneg %p264
    $region30: #{tpu_custom_call.1} parent=5 // pred_check_branch
      %267 = sbr.rel (%p265) target = $region32
    $region31: #{tpu_custom_call.1} parent=5 // pred_region
      // Predicated region
      $region33: #{tpu_custom_call.1} parent=31 // pred_check
        %p268 = pneg %p47
      $region34: #{tpu_custom_call.1} parent=31 // pred_check_branch
        %270 = sbr.rel (%p268) target = $region36
      $region35: #{tpu_custom_call.1} parent=31 // pred_region
        %s271 = smul.u32 8, %s21
        %p272 = scmp.lt.s32.totalorder %s20, 1
        %s273 = scalar_select %p272, %s20, 1
        %p274 = scmp.lt.s32.totalorder %s271, 15
        %s275 = scalar_select %p274, %s271, 15
        %s276 = smul.addr %s275, 2
        %s277 = smul.addr %s273, 32
        %s278 = sadd.s32 %s276, %s277
        %s279 = smul.addr %s278, 8
        %s280 = scalar_lea.vmem %s0, %s279
        %s281 = smul.u32 8, %s21
      $region36: #{tpu_custom_call.1} parent=31 // pred_fallthru
        _
      // Predicated region
      $region37: #{tpu_custom_call.1} parent=31 // pred_check
        %p282 = pneg %p83
      $region38: #{tpu_custom_call.1} parent=31 // pred_check_branch
        %284 = sbr.rel (%p282) target = $region40
      $region39: #{tpu_custom_call.1} parent=31 // pred_region
        %s285 = smul.u32 %s21, 8
        %s286 = ssub.s32 %s285, 1
        %p287 = scmp.gt.s32.totalorder %s286, 0
        %s288 = scalar_select %p287, %s286, 0
        %p289 = scmp.lt.s32.totalorder %s20, 1
        %s290 = scalar_select %p289, %s20, 1
        %p291 = scmp.lt.s32.totalorder %s288, 15
        %s292 = scalar_select %p291, %s288, 15
        %s293 = smul.addr %s292, 2
        %s294 = smul.addr %s290, 32
        %s295 = sadd.s32 %s293, %s294
        %s296 = smul.addr %s295, 8
        %s297 = scalar_lea.vmem %s1, %s296
        %s298 = smul.u32 %s21, 8
        %s299 = ssub.s32 %s298, 1
        %p300 = scmp.gt.s32.totalorder %s299, 0
        %s301 = scalar_select %p300, %s299, 0
      $region40: #{tpu_custom_call.1} parent=31 // pred_fallthru
        _
      // Predicated region
      $region41: #{tpu_custom_call.1} parent=31 // pred_check
        %p302 = pneg %p119
      $region42: #{tpu_custom_call.1} parent=31 // pred_check_branch
        %304 = sbr.rel (%p302) target = $region44
      $region43: #{tpu_custom_call.1} parent=31 // pred_region
        %s305 = sadd.s32 %s21, 1
        %s306 = smul.u32 %s305, 8
        %p307 = scmp.lt.s32.totalorder %s306, 15
        %s308 = scalar_select %p307, %s306, 15
        %p309 = scmp.lt.s32.totalorder %s20, 1
        %s310 = scalar_select %p309, %s20, 1
        %p311 = scmp.lt.s32.totalorder %s308, 15
        %s312 = scalar_select %p311, %s308, 15
        %s313 = smul.addr %s312, 2
        %s314 = smul.addr %s310, 32
        %s315 = sadd.s32 %s313, %s314
        %s316 = smul.addr %s315, 8
        %s317 = scalar_lea.vmem %s2, %s316
        %s318 = sadd.s32 %s21, 1
        %s319 = smul.u32 %s318, 8
        %p320 = scmp.lt.s32.totalorder %s319, 15
        %s321 = scalar_select %p320, %s319, 15
      $region44: #{tpu_custom_call.1} parent=31 // pred_fallthru
        _
    $region32: #{tpu_custom_call.1} parent=5 // pred_fallthru
      _
    %p322 = scmp.le.s32.totalorder 1, %s13
    %p323 = scmp.lt.s32.totalorder %s13, 5
    %p324 = pnand %p322, %p323
    %p325 = pneg %p324
    // Predicated region
    $region45: #{tpu_custom_call.1} parent=5 // pred_check
      _
    $region46: #{tpu_custom_call.1} parent=5 // pred_check_branch
      %327 = sbr.rel (%p324) target = $region48
    $region47: #{tpu_custom_call.1} parent=5 // pred_region
      %s328 = ssub.s32 %s13, 1
      %s329 = smul.u32 8, %s23
      %p330 = scmp.lt.s32.totalorder %s22, 1
      %s331 = scalar_select %p330, %s22, 1
      %p332 = scmp.lt.s32.totalorder %s329, 15
      %s333 = scalar_select %p332, %s329, 15
      %s334 = smul.addr %s333, 2
      %s335 = smul.addr %s331, 32
      %s336 = sadd.s32 %s334, %s335
      %s337 = smul.addr %s336, 8
      %s338 = scalar_lea.vmem %s0, %s337
      %p339 = pneg %p53
      %p340 = pneg %p50
      %s341 = smul.u32 %s23, 8
      %s342 = ssub.s32 %s341, 1
      %p343 = scmp.gt.s32.totalorder %s342, 0
      %s344 = scalar_select %p343, %s342, 0
      %p345 = scmp.lt.s32.totalorder %s22, 1
      %s346 = scalar_select %p345, %s22, 1
      %p347 = scmp.lt.s32.totalorder %s344, 15
      %s348 = scalar_select %p347, %s344, 15
      %s349 = smul.addr %s348, 2
      %s350 = smul.addr %s346, 32
      %s351 = sadd.s32 %s349, %s350
      %s352 = smul.addr %s351, 8
      %s353 = scalar_lea.vmem %s1, %s352
      %p354 = pneg %p89
      %p355 = pneg %p86
      %s356 = sadd.s32 %s23, 1
      %s357 = smul.u32 %s356, 8
      %p358 = scmp.lt.s32.totalorder %s357, 15
      %s359 = scalar_select %p358, %s357, 15
      %p360 = scmp.lt.s32.totalorder %s22, 1
      %s361 = scalar_select %p360, %s22, 1
      %p362 = scmp.lt.s32.totalorder %s359, 15
      %s363 = scalar_select %p362, %s359, 15
      %s364 = smul.addr %s363, 2
      %s365 = smul.addr %s361, 32
      %s366 = sadd.s32 %s364, %s365
      %s367 = smul.addr %s366, 8
      %s368 = scalar_lea.vmem %s2, %s367
      %p369 = pneg %p125
      %p370 = pneg %p122
      %p371 = pneg %p146
      %p372 = pneg %p143
      %p373 = pneg %p167
      %p374 = pneg %p164
      %p375 = pneg %p188
      %p376 = pneg %p185
      %p377 = pneg %p209
      %p378 = pneg %p206
      %p379 = pneg %p237
      %p380 = pneg %p234
      %s381 = smul.u32 8, %s23
      %p382 = scmp.lt.s32.totalorder %s22, 1
      %s383 = scalar_select %p382, %s22, 1
      %p384 = scmp.lt.s32.totalorder %s381, 15
      %s385 = scalar_select %p384, %s381, 15
      %s386 = smul.addr %s385, 2
      %s387 = smul.addr %s383, 32
      %s388 = sadd.s32 %s386, %s387
      %s389 = smul.addr %s388, 8
      %s390 = scalar_lea.vmem %s7, %s389
      %s391 = smul.u32 8, %s23
      %p392 = scmp.lt.s32.totalorder %s22, 1
      %s393 = scalar_select %p392, %s22, 1
      %p394 = scmp.lt.s32.totalorder %s391, 15
      %s395 = scalar_select %p394, %s391, 15
      %s396 = smul.addr %s395, 2
      %s397 = smul.addr %s393, 32
      %s398 = sadd.s32 %s396, %s397
      %s399 = smul.addr %s398, 8
      %s400 = scalar_lea.vmem %s0, %s399
      %s401 = smul.u32 8, %s23
      %s402 = smul.u32 %s23, 8
      %s403 = ssub.s32 %s402, 1
      %p404 = scmp.gt.s32.totalorder %s403, 0
      %s405 = scalar_select %p404, %s403, 0
      %p406 = scmp.lt.s32.totalorder %s22, 1
      %s407 = scalar_select %p406, %s22, 1
      %p408 = scmp.lt.s32.totalorder %s405, 15
      %s409 = scalar_select %p408, %s405, 15
      %s410 = smul.addr %s409, 2
      %s411 = smul.addr %s407, 32
      %s412 = sadd.s32 %s410, %s411
      %s413 = smul.addr %s412, 8
      %s414 = scalar_lea.vmem %s1, %s413
      %s415 = smul.u32 %s23, 8
      %s416 = ssub.s32 %s415, 1
      %p417 = scmp.gt.s32.totalorder %s416, 0
      %s418 = scalar_select %p417, %s416, 0
      %s419 = sadd.s32 %s23, 1
      %s420 = smul.u32 %s419, 8
      %p421 = scmp.lt.s32.totalorder %s420, 15
      %s422 = scalar_select %p421, %s420, 15
      %p423 = scmp.lt.s32.totalorder %s22, 1
      %s424 = scalar_select %p423, %s22, 1
      %p425 = scmp.lt.s32.totalorder %s422, 15
      %s426 = scalar_select %p425, %s422, 15
      %s427 = smul.addr %s426, 2
      %s428 = smul.addr %s424, 32
      %s429 = sadd.s32 %s427, %s428
      %s430 = smul.addr %s429, 8
      %s431 = scalar_lea.vmem %s2, %s430
      %s432 = sadd.s32 %s23, 1
      %s433 = smul.u32 %s432, 8
      %p434 = scmp.lt.s32.totalorder %s433, 15
      %s435 = scalar_select %p434, %s433, 15
      %s436 = smul.u32 8, %s23
      %p437 = scmp.lt.s32.totalorder %s22, 1
      %s438 = scalar_select %p437, %s22, 1
      %p439 = scmp.lt.s32.totalorder %s436, 15
      %s440 = scalar_select %p439, %s436, 15
      %s441 = smul.addr %s440, 2
      %s442 = smul.addr %s438, 32
      %s443 = sadd.s32 %s441, %s442
      %s444 = smul.addr %s443, 8
      %s445 = scalar_lea.vmem %s7, %s444
      %s446 = smul.u32 8, %s23
      %v447 = vld [vmem:[%s3] sm:$0xf]
      %v448 = vld [vmem:[%s4] sm:$0x1]
      %v449 = vld [vmem:[%s400] sm:$0xff]
      %v450 = vld [vmem:[%s400 + $0x8] sm:$0xff]
      %v451 = vld [vmem:[%s400 + $0x10] sm:$0xff]
      %v452 = vld [vmem:[%s400 + $0x18] sm:$0xff]
      %v453 = vld [vmem:[%s400 + $0x20] sm:$0xff]
      %v454 = vld [vmem:[%s400 + $0x28] sm:$0xff]
      %v455 = vld [vmem:[%s400 + $0x30] sm:$0xff]
      %v456 = vld [vmem:[%s400 + $0x38] sm:$0xff]
      %v457 = vld [vmem:[%s400 + $0x40] sm:$0xff]
      %v458 = vld [vmem:[%s400 + $0x48] sm:$0xff]
      %v459 = vld [vmem:[%s400 + $0x50] sm:$0xff]
      %v460 = vld [vmem:[%s400 + $0x58] sm:$0xff]
      %v461 = vld [vmem:[%s400 + $0x60] sm:$0xff]
      %v462 = vld [vmem:[%s400 + $0x68] sm:$0xff]
      %v463 = vld [vmem:[%s400 + $0x70] sm:$0xff]
      %v464 = vld [vmem:[%s400 + $0x78] sm:$0xff]
      %v466 = vlaneseq
      %v467 = vshrl.u32 %v466, 7
      %v468 = vsub.s32 0, %v467
      %v469 = vrot.slane %v448, %v468
      %vm471 = vcmask 31744
      %v473 = vsel %vm471, %v449, 0
      %v476 = vsel %vm471, %v450, 0
      %v479 = vsel %vm471, %v451, 0
      %v482 = vsel %vm471, %v452, 0
      %v485 = vsel %vm471, %v453, 0
      %v488 = vsel %vm471, %v454, 0
      %v491 = vsel %vm471, %v455, 0
      %v494 = vsel %vm471, %v456, 0
      %v497 = vsel %vm471, %v457, 0
      %v500 = vsel %vm471, %v458, 0
      %v503 = vsel %vm471, %v459, 0
      %v506 = vsel %vm471, %v460, 0
      %v509 = vsel %vm471, %v461, 0
      %v512 = vsel %vm471, %v462, 0
      %v515 = vsel %vm471, %v463, 0
      %v518 = vsel %vm471, %v464, 0
      %vm520 = vcmask 1043456
      %v522 = vsel %vm520, %v447, 0
      %524 = vmatprep.subr.mxu0 0.0
      %525 = vmatpush1.msra.mxu0 0.0
      %526 = vmatprep.subr.mxu0 0.0
      %527 = vmatpush1.msra.mxu0 0.0
      %528 = vmatprep.subr.mxu0 0.0
      %529 = vmatpush1.msra.mxu0 0.0
      %530 = vmatprep.subr.mxu0 0.0
      %531 = vmatpush1.msra.mxu0 0.0
      %532 = vmatprep.subr.mxu0 0.0
      %533 = vmatpush1.msra.mxu0 0.0
      %534 = vmatprep.subr.mxu0 0.0
      %535 = vmatpush1.msra.mxu0 0.0
      %536 = vmatprep.subr.mxu0 0.0
      %537 = vmatpush1.msra.mxu0 0.0
      %538 = vmatprep.subr.mxu0 0.0
      %539 = vmatpush1.msra.mxu0 0.0
      %540 = vmatprep.subr.mxu0 0.0
      %541 = vmatpush1.msra.mxu0 0.0
      %542 = vmatprep.subr.mxu0 0.0
      %543 = vmatpush1.msra.mxu0 0.0
      %544 = vmatprep.subr.mxu0 0.0
      %545 = vmatpush1.msra.mxu0 0.0
      %546 = vmatprep.subr.mxu0 0.0
      %547 = vmatpush1.msra.mxu0 0.0
      %548 = vmatprep.subr.mxu0 0.0
      %549 = vmatpush1.msra.mxu0 0.0
      %550 = vmatprep.subr.mxu0 0.0
      %551 = vmatpush1.msra.mxu0 0.0
      %552 = vmatprep.subr.mxu0 0.0
      %553 = vmatpush1.msra.mxu0 0.0
      %554 = vmatprep.subr.mxu0 0.0
      %555 = vmatpush1.msra.mxu0 %v522
      %556 = vmatprep.subr.mxu0 0.0
      %557 = vmatpush2.msra.mxu0 0.0
      %558 = vmatprep.subr.mxu0 0.0
      %559 = vmatpush2.msra.mxu0 0.0
      %560 = vmatprep.subr.mxu0 0.0
      %561 = vmatpush2.msra.mxu0 0.0
      %562 = vmatprep.subr.mxu0 0.0
      %563 = vmatpush2.msra.mxu0 0.0
      %564 = vmatprep.subr.mxu0 0.0
      %565 = vmatpush2.msra.mxu0 0.0
      %566 = vmatprep.subr.mxu0 0.0
      %567 = vmatpush2.msra.mxu0 0.0
      %568 = vmatprep.subr.mxu0 0.0
      %569 = vmatpush2.msra.mxu0 0.0
      %570 = vmatprep.subr.mxu0 0.0
      %571 = vmatpush2.msra.mxu0 0.0
      %572 = vmatprep.subr.mxu0 0.0
      %573 = vmatpush2.msra.mxu0 0.0
      %574 = vmatprep.subr.mxu0 0.0
      %575 = vmatpush2.msra.mxu0 0.0
      %576 = vmatprep.subr.mxu0 0.0
      %577 = vmatpush2.msra.mxu0 0.0
      %578 = vmatprep.subr.mxu0 0.0
      %579 = vmatpush2.msra.mxu0 0.0
      %580 = vmatprep.subr.mxu0 0.0
      %581 = vmatpush2.msra.mxu0 0.0
      %582 = vmatprep.subr.mxu0 0.0
      %583 = vmatpush2.msra.mxu0 0.0
      %584 = vmatprep.subr.mxu0 0.0
      %585 = vmatpush2.msra.mxu0 0.0
      %586 = vmatprep.subr.mxu0 0.0
      %587 = vmatpush2.msra.mxu0 0.0
      %588 = vmatprep.mubr.f32.mxu0 0.0
      %589 = vmatmul.mubr.f32.gmra.mxu0 %v473
      %v590 = vpop.f32.mrf.mxu0
      %v591 = vadd.f32 %v469, %v590
      %v592 = vpop.f32.mrf.mxu0
      %593 = vmatprep.mubr.f32.mxu0 0.0
      %594 = vmatmul.mubr.f32.gmra.mxu0 %v476
      %v595 = vpop.f32.mrf.mxu0
      %v596 = vadd.f32 %v469, %v595
      %v597 = vpop.f32.mrf.mxu0
      %598 = vmatprep.mubr.f32.mxu0 0.0
      %599 = vmatmul.mubr.f32.gmra.mxu0 %v479
      %v600 = vpop.f32.mrf.mxu0
      %v601 = vadd.f32 %v469, %v600
      %v602 = vpop.f32.mrf.mxu0
      %603 = vmatprep.mubr.f32.mxu0 0.0
      %604 = vmatmul.mubr.f32.gmra.mxu0 %v482
      %v605 = vpop.f32.mrf.mxu0
      %v606 = vadd.f32 %v469, %v605
      %v607 = vpop.f32.mrf.mxu0
      %608 = vmatprep.mubr.f32.mxu0 0.0
      %609 = vmatmul.mubr.f32.gmra.mxu0 %v485
      %v610 = vpop.f32.mrf.mxu0
      %v611 = vadd.f32 %v469, %v610
      %v612 = vpop.f32.mrf.mxu0
      %613 = vmatprep.mubr.f32.mxu0 0.0
      %614 = vmatmul.mubr.f32.gmra.mxu0 %v488
      %v615 = vpop.f32.mrf.mxu0
      %v616 = vadd.f32 %v469, %v615
      %v617 = vpop.f32.mrf.mxu0
      %618 = vmatprep.mubr.f32.mxu0 0.0
      %619 = vmatmul.mubr.f32.gmra.mxu0 %v491
      %v620 = vpop.f32.mrf.mxu0
      %v621 = vadd.f32 %v469, %v620
      %v622 = vpop.f32.mrf.mxu0
      %623 = vmatprep.mubr.f32.mxu0 0.0
      %624 = vmatmul.mubr.f32.gmra.mxu0 %v494
      %v625 = vpop.f32.mrf.mxu0
      %v626 = vadd.f32 %v469, %v625
      %v627 = vpop.f32.mrf.mxu0
      %628 = vmatprep.mubr.f32.mxu0 0.0
      %629 = vmatmul.mubr.f32.gmra.mxu0 %v497
      %v630 = vpop.f32.mrf.mxu0
      %v631 = vadd.f32 %v469, %v630
      %v632 = vpop.f32.mrf.mxu0
      %633 = vmatprep.mubr.f32.mxu0 0.0
      %634 = vmatmul.mubr.f32.gmra.mxu0 %v500
      %v635 = vpop.f32.mrf.mxu0
      %v636 = vadd.f32 %v469, %v635
      %v637 = vpop.f32.mrf.mxu0
      %638 = vmatprep.mubr.f32.mxu0 0.0
      %639 = vmatmul.mubr.f32.gmra.mxu0 %v503
      %v640 = vpop.f32.mrf.mxu0
      %v641 = vadd.f32 %v469, %v640
      %v642 = vpop.f32.mrf.mxu0
      %643 = vmatprep.mubr.f32.mxu0 0.0
      %644 = vmatmul.mubr.f32.gmra.mxu0 %v506
      %v645 = vpop.f32.mrf.mxu0
      %v646 = vadd.f32 %v469, %v645
      %v647 = vpop.f32.mrf.mxu0
      %648 = vmatprep.mubr.f32.mxu0 0.0
      %649 = vmatmul.mubr.f32.gmra.mxu0 %v509
      %v650 = vpop.f32.mrf.mxu0
      %v651 = vadd.f32 %v469, %v650
      %v652 = vpop.f32.mrf.mxu0
      %653 = vmatprep.mubr.f32.mxu0 0.0
      %654 = vmatmul.mubr.f32.gmra.mxu0 %v512
      %v655 = vpop.f32.mrf.mxu0
      %v656 = vadd.f32 %v469, %v655
      %v657 = vpop.f32.mrf.mxu0
      %658 = vmatprep.mubr.f32.mxu0 0.0
      %659 = vmatmul.mubr.f32.gmra.mxu0 %v515
      %v660 = vpop.f32.mrf.mxu0
      %v661 = vadd.f32 %v469, %v660
      %v662 = vpop.f32.mrf.mxu0
      %663 = vmatprep.mubr.f32.mxu0 0.0
      %664 = vmatmul.mubr.f32.gmra.mxu0 %v518
      %v665 = vpop.f32.mrf.mxu0
      %v666 = vadd.f32 %v469, %v665
      %v667 = vpop.f32.mrf.mxu0
      %668 = vdwg.mxu0
      %v669 = vmul.f32 %v591, 0.1
      %v670 = vmul.f32 %v596, 0.1
      %v671 = vmul.f32 %v601, 0.1
      %v672 = vmul.f32 %v606, 0.1
      %v673 = vmul.f32 %v611, 0.1
      %v674 = vmul.f32 %v616, 0.1
      %v675 = vmul.f32 %v621, 0.1
      %v676 = vmul.f32 %v626, 0.1
      %v677 = vmul.f32 %v631, 0.1
      %v678 = vmul.f32 %v636, 0.1
      %v679 = vmul.f32 %v641, 0.1
      %v680 = vmul.f32 %v646, 0.1
      %v681 = vmul.f32 %v651, 0.1
      %v682 = vmul.f32 %v656, 0.1
      %v683 = vmul.f32 %v661, 0.1
      %v684 = vmul.f32 %v666, 0.1
      %v685 = vmax.f32 %v591, %v669
      %v686 = vmax.f32 %v596, %v670
      %v687 = vmax.f32 %v601, %v671
      %v688 = vmax.f32 %v606, %v672
      %v689 = vmax.f32 %v611, %v673
      %v690 = vmax.f32 %v616, %v674
      %v691 = vmax.f32 %v621, %v675
      %v692 = vmax.f32 %v626, %v676
      %v693 = vmax.f32 %v631, %v677
      %v694 = vmax.f32 %v636, %v678
      %v695 = vmax.f32 %v641, %v679
      %v696 = vmax.f32 %v646, %v680
      %v697 = vmax.f32 %v651, %v681
      %v698 = vmax.f32 %v656, %v682
      %v699 = vmax.f32 %v661, %v683
      %v700 = vmax.f32 %v666, %v684
      %v701 = vld [vmem:[%s414] sm:$0xff]
      %v702 = vld [vmem:[%s414 + $0x8] sm:$0xff]
      %v704 = vsel %vm471, %v701, 0
      %v707 = vsel %vm471, %v702, 0
      %709 = vmatprep.subr.mxu0 0.0
      %710 = vmatpush1.msra.mxu0 0.0
      %711 = vmatprep.subr.mxu0 0.0
      %712 = vmatpush1.msra.mxu0 0.0
      %713 = vmatprep.subr.mxu0 0.0
      %714 = vmatpush1.msra.mxu0 0.0
      %715 = vmatprep.subr.mxu0 0.0
      %716 = vmatpush1.msra.mxu0 0.0
      %717 = vmatprep.subr.mxu0 0.0
      %718 = vmatpush1.msra.mxu0 0.0
      %719 = vmatprep.subr.mxu0 0.0
      %720 = vmatpush1.msra.mxu0 0.0
      %721 = vmatprep.subr.mxu0 0.0
      %722 = vmatpush1.msra.mxu0 0.0
      %723 = vmatprep.subr.mxu0 0.0
      %724 = vmatpush1.msra.mxu0 0.0
      %725 = vmatprep.subr.mxu0 0.0
      %726 = vmatpush1.msra.mxu0 0.0
      %727 = vmatprep.subr.mxu0 0.0
      %728 = vmatpush1.msra.mxu0 0.0
      %729 = vmatprep.subr.mxu0 0.0
      %730 = vmatpush1.msra.mxu0 0.0
      %731 = vmatprep.subr.mxu0 0.0
      %732 = vmatpush1.msra.mxu0 0.0
      %733 = vmatprep.subr.mxu0 0.0
      %734 = vmatpush1.msra.mxu0 0.0
      %735 = vmatprep.subr.mxu0 0.0
      %736 = vmatpush1.msra.mxu0 0.0
      %737 = vmatprep.subr.mxu0 0.0
      %738 = vmatpush1.msra.mxu0 0.0
      %739 = vmatprep.subr.mxu0 0.0
      %740 = vmatpush1.msra.mxu0 %v522
      %741 = vmatprep.subr.mxu0 0.0
      %742 = vmatpush2.msra.mxu0 0.0
      %743 = vmatprep.subr.mxu0 0.0
      %744 = vmatpush2.msra.mxu0 0.0
      %745 = vmatprep.subr.mxu0 0.0
      %746 = vmatpush2.msra.mxu0 0.0
      %747 = vmatprep.subr.mxu0 0.0
      %748 = vmatpush2.msra.mxu0 0.0
      %749 = vmatprep.subr.mxu0 0.0
      %750 = vmatpush2.msra.mxu0 0.0
      %751 = vmatprep.subr.mxu0 0.0
      %752 = vmatpush2.msra.mxu0 0.0
      %753 = vmatprep.subr.mxu0 0.0
      %754 = vmatpush2.msra.mxu0 0.0
      %755 = vmatprep.subr.mxu0 0.0
      %756 = vmatpush2.msra.mxu0 0.0
      %757 = vmatprep.subr.mxu0 0.0
      %758 = vmatpush2.msra.mxu0 0.0
      %759 = vmatprep.subr.mxu0 0.0
      %760 = vmatpush2.msra.mxu0 0.0
      %761 = vmatprep.subr.mxu0 0.0
      %762 = vmatpush2.msra.mxu0 0.0
      %763 = vmatprep.subr.mxu0 0.0
      %764 = vmatpush2.msra.mxu0 0.0
      %765 = vmatprep.subr.mxu0 0.0
      %766 = vmatpush2.msra.mxu0 0.0
      %767 = vmatprep.subr.mxu0 0.0
      %768 = vmatpush2.msra.mxu0 0.0
      %769 = vmatprep.subr.mxu0 0.0
      %770 = vmatpush2.msra.mxu0 0.0
      %771 = vmatprep.subr.mxu0 0.0
      %772 = vmatpush2.msra.mxu0 0.0
      %773 = vmatprep.mubr.f32.mxu0 0.0
      %774 = vmatmul.mubr.f32.gmra.mxu0 %v704
      %v775 = vpop.f32.mrf.mxu0
      %v776 = vadd.f32 %v469, %v775
      %v777 = vpop.f32.mrf.mxu0
      %778 = vmatprep.mubr.f32.mxu0 0.0
      %779 = vmatmul.mubr.f32.gmra.mxu0 %v707
      %v780 = vpop.f32.mrf.mxu0
      %v781 = vadd.f32 %v469, %v780
      %v782 = vpop.f32.mrf.mxu0
      %783 = vdwg.mxu0
      %v784 = vmul.f32 %v776, 0.1
      %v785 = vmul.f32 %v781, 0.1
      %v786 = vmax.f32 %v776, %v784
      %v787 = vmax.f32 %v781, %v785
      %v788 = vld [vmem:[%s431] sm:$0xff]
      %v789 = vld [vmem:[%s431 + $0x8] sm:$0xff]
      %v791 = vsel %vm471, %v788, 0
      %v794 = vsel %vm471, %v789, 0
      %796 = vmatprep.subr.mxu0 0.0
      %797 = vmatpush1.msra.mxu0 0.0
      %798 = vmatprep.subr.mxu0 0.0
      %799 = vmatpush1.msra.mxu0 0.0
      %800 = vmatprep.subr.mxu0 0.0
      %801 = vmatpush1.msra.mxu0 0.0
      %802 = vmatprep.subr.mxu0 0.0
      %803 = vmatpush1.msra.mxu0 0.0
      %804 = vmatprep.subr.mxu0 0.0
      %805 = vmatpush1.msra.mxu0 0.0
      %806 = vmatprep.subr.mxu0 0.0
      %807 = vmatpush1.msra.mxu0 0.0
      %808 = vmatprep.subr.mxu0 0.0
      %809 = vmatpush1.msra.mxu0 0.0
      %810 = vmatprep.subr.mxu0 0.0
      %811 = vmatpush1.msra.mxu0 0.0
      %812 = vmatprep.subr.mxu0 0.0
      %813 = vmatpush1.msra.mxu0 0.0
      %814 = vmatprep.subr.mxu0 0.0
      %815 = vmatpush1.msra.mxu0 0.0
      %816 = vmatprep.subr.mxu0 0.0
      %817 = vmatpush1.msra.mxu0 0.0
      %818 = vmatprep.subr.mxu0 0.0
      %819 = vmatpush1.msra.mxu0 0.0
      %820 = vmatprep.subr.mxu0 0.0
      %821 = vmatpush1.msra.mxu0 0.0
      %822 = vmatprep.subr.mxu0 0.0
      %823 = vmatpush1.msra.mxu0 0.0
      %824 = vmatprep.subr.mxu0 0.0
      %825 = vmatpush1.msra.mxu0 0.0
      %826 = vmatprep.subr.mxu0 0.0
      %827 = vmatpush1.msra.mxu0 %v522
      %828 = vmatprep.subr.mxu0 0.0
      %829 = vmatpush2.msra.mxu0 0.0
      %830 = vmatprep.subr.mxu0 0.0
      %831 = vmatpush2.msra.mxu0 0.0
      %832 = vmatprep.subr.mxu0 0.0
      %833 = vmatpush2.msra.mxu0 0.0
      %834 = vmatprep.subr.mxu0 0.0
      %835 = vmatpush2.msra.mxu0 0.0
      %836 = vmatprep.subr.mxu0 0.0
      %837 = vmatpush2.msra.mxu0 0.0
      %838 = vmatprep.subr.mxu0 0.0
      %839 = vmatpush2.msra.mxu0 0.0
      %840 = vmatprep.subr.mxu0 0.0
      %841 = vmatpush2.msra.mxu0 0.0
      %842 = vmatprep.subr.mxu0 0.0
      %843 = vmatpush2.msra.mxu0 0.0
      %844 = vmatprep.subr.mxu0 0.0
      %845 = vmatpush2.msra.mxu0 0.0
      %846 = vmatprep.subr.mxu0 0.0
      %847 = vmatpush2.msra.mxu0 0.0
      %848 = vmatprep.subr.mxu0 0.0
      %849 = vmatpush2.msra.mxu0 0.0
      %850 = vmatprep.subr.mxu0 0.0
      %851 = vmatpush2.msra.mxu0 0.0
      %852 = vmatprep.subr.mxu0 0.0
      %853 = vmatpush2.msra.mxu0 0.0
      %854 = vmatprep.subr.mxu0 0.0
      %855 = vmatpush2.msra.mxu0 0.0
      %856 = vmatprep.subr.mxu0 0.0
      %857 = vmatpush2.msra.mxu0 0.0
      %858 = vmatprep.subr.mxu0 0.0
      %859 = vmatpush2.msra.mxu0 0.0
      %860 = vmatprep.mubr.f32.mxu0 0.0
      %861 = vmatmul.mubr.f32.gmra.mxu0 %v791
      %v862 = vpop.f32.mrf.mxu0
      %v863 = vadd.f32 %v469, %v862
      %v864 = vpop.f32.mrf.mxu0
      %865 = vmatprep.mubr.f32.mxu0 0.0
      %866 = vmatmul.mubr.f32.gmra.mxu0 %v794
      %v867 = vpop.f32.mrf.mxu0
      %v868 = vadd.f32 %v469, %v867
      %v869 = vpop.f32.mrf.mxu0
      %870 = vdwg.mxu0
      %v871 = vmul.f32 %v863, 0.1
      %v872 = vmul.f32 %v868, 0.1
      %v873 = vmax.f32 %v863, %v871
      %v874 = vmax.f32 %v868, %v872
      %p875 = scmp.gt.s32.totalorder %s23, 0
      %s876 = scalar_select %p875, 1, 0
      %s877 = scvt.s32.f32 %s876
      %v878 = vstv %s877
      %v879 = vmul.f32 %v786, %v878
      %v880 = vmul.f32 %v787, %v878
      %p881 = scmp.lt.s32.totalorder %s23, 1
      %s882 = scalar_select %p881, 1, 0
      %s883 = scvt.s32.f32 %s882
      %v884 = vstv %s883
      %v885 = vmul.f32 %v873, %v884
      %v886 = vmul.f32 %v874, %v884
      %vm907 = vcmask 1040384
      %v908 = vrot.slane %v879, 7
      %v909 = vrot.slane %v880, 7
      %v910 = vsel %vm907, %v908, %v909
      %v911 = vrot.slane %v685, 7
      %v912 = vrot.slane %v686, 7
      %v913 = vsel %vm907, %v911, %v912
      %v914 = vrot.slane %v687, 7
      %v915 = vrot.slane %v688, 7
      %v916 = vsel %vm907, %v914, %v915
      %v917 = vrot.slane %v689, 7
      %v918 = vrot.slane %v690, 7
      %v919 = vsel %vm907, %v917, %v918
      %v920 = vrot.slane %v691, 7
      %v921 = vrot.slane %v692, 7
      %v922 = vsel %vm907, %v920, %v921
      %v923 = vrot.slane %v693, 7
      %v924 = vrot.slane %v694, 7
      %v925 = vsel %vm907, %v923, %v924
      %v926 = vrot.slane %v695, 7
      %v927 = vrot.slane %v696, 7
      %v928 = vsel %vm907, %v926, %v927
      %v929 = vrot.slane %v697, 7
      %v930 = vrot.slane %v698, 7
      %v931 = vsel %vm907, %v929, %v930
      %v932 = vrot.slane %v699, 7
      %v933 = vrot.slane %v700, 7
      %v934 = vsel %vm907, %v932, %v933
      %v935 = vrot.slane %v885, 7
      %v936 = vrot.slane %v886, 7
      %v937 = vsel %vm907, %v935, %v936
      %v958 = vsel %vm907, 0.0, %v908
      %v959 = vsel %vm907, 0.0, %v911
      %v960 = vsel %vm907, 0.0, %v914
      %v961 = vsel %vm907, 0.0, %v917
      %v962 = vsel %vm907, 0.0, %v920
      %v963 = vsel %vm907, 0.0, %v923
      %v964 = vsel %vm907, 0.0, %v926
      %v965 = vsel %vm907, 0.0, %v929
      %v966 = vsel %vm907, 0.0, %v932
      %v967 = vsel %vm907, 0.0, %v935
      %v968 = vsel %vm907, %v909, 0.0
      %v969 = vsel %vm907, %v912, 0.0
      %v970 = vsel %vm907, %v915, 0.0
      %v971 = vsel %vm907, %v918, 0.0
      %v972 = vsel %vm907, %v921, 0.0
      %v973 = vsel %vm907, %v924, 0.0
      %v974 = vsel %vm907, %v927, 0.0
      %v975 = vsel %vm907, %v930, 0.0
      %v976 = vsel %vm907, %v933, 0.0
      %v977 = vsel %vm907, %v936, 0.0
      %v978 = vld [vmem:[%s5] sm:$0x3]
      %vm995 = vcmask 1046528
      %v996 = vrot.slane %v958, 1
      %v997 = vrot.slane %v910, 1
      %v998 = vsel %vm995, %v996, %v997
      %v999 = vrot.slane %v968, 1
      %v1000 = vsel %vm995, %v997, %v999
      %v1001 = vrot.slane %v959, 1
      %v1002 = vrot.slane %v913, 1
      %v1003 = vsel %vm995, %v1001, %v1002
      %v1004 = vrot.slane %v969, 1
      %v1005 = vsel %vm995, %v1002, %v1004
      %v1006 = vrot.slane %v960, 1
      %v1007 = vrot.slane %v916, 1
      %v1008 = vsel %vm995, %v1006, %v1007
      %v1009 = vrot.slane %v970, 1
      %v1010 = vsel %vm995, %v1007, %v1009
      %v1011 = vrot.slane %v961, 1
      %v1012 = vrot.slane %v919, 1
      %v1013 = vsel %vm995, %v1011, %v1012
      %v1014 = vrot.slane %v971, 1
      %v1015 = vsel %vm995, %v1012, %v1014
      %v1016 = vrot.slane %v962, 1
      %v1017 = vrot.slane %v922, 1
      %v1018 = vsel %vm995, %v1016, %v1017
      %v1019 = vrot.slane %v972, 1
      %v1020 = vsel %vm995, %v1017, %v1019
      %v1021 = vrot.slane %v963, 1
      %v1022 = vrot.slane %v925, 1
      %v1023 = vsel %vm995, %v1021, %v1022
      %v1024 = vrot.slane %v973, 1
      %v1025 = vsel %vm995, %v1022, %v1024
      %v1026 = vrot.slane %v964, 1
      %v1027 = vrot.slane %v928, 1
      %v1028 = vsel %vm995, %v1026, %v1027
      %v1029 = vrot.slane %v974, 1
      %v1030 = vsel %vm995, %v1027, %v1029
      %v1031 = vrot.slane %v965, 1
      %v1032 = vrot.slane %v931, 1
      %v1033 = vsel %vm995, %v1031, %v1032
      %v1034 = vrot.slane %v975, 1
      %v1035 = vsel %vm995, %v1032, %v1034
      %s1036 = scalar_lea.vmem %s5, 2
      %v1037 = vld [vmem:[%s1036] sm:$0x3]
      %vm1038 = vcmask 15360
      %v1039 = vsel %vm1038, %v998, 0
      %v1041 = vsel %vm1038, %v1000, 0
      %v1043 = vsel %vm1038, %v1003, 0
      %v1045 = vsel %vm1038, %v1005, 0
      %v1047 = vsel %vm1038, %v1008, 0
      %v1049 = vsel %vm1038, %v1010, 0
      %v1051 = vsel %vm1038, %v1013, 0
      %v1053 = vsel %vm1038, %v1015, 0
      %v1055 = vsel %vm1038, %v1018, 0
      %v1057 = vsel %vm1038, %v1020, 0
      %v1059 = vsel %vm1038, %v1023, 0
      %v1061 = vsel %vm1038, %v1025, 0
      %v1063 = vsel %vm1038, %v1028, 0
      %v1065 = vsel %vm1038, %v1030, 0
      %v1067 = vsel %vm1038, %v1033, 0
      %v1069 = vsel %vm1038, %v1035, 0
      %vm1071 = vcmask 1041408
      %v1073 = vsel %vm1071, %v1037, 0
      %1075 = vmatprep.subr.mxu0 0.0
      %1076 = vmatpush1.msra.mxu0 0.0
      %1077 = vmatprep.subr.mxu0 0.0
      %1078 = vmatpush1.msra.mxu0 0.0
      %1079 = vmatprep.subr.mxu0 0.0
      %1080 = vmatpush1.msra.mxu0 0.0
      %1081 = vmatprep.subr.mxu0 0.0
      %1082 = vmatpush1.msra.mxu0 0.0
      %1083 = vmatprep.subr.mxu0 0.0
      %1084 = vmatpush1.msra.mxu0 0.0
      %1085 = vmatprep.subr.mxu0 0.0
      %1086 = vmatpush1.msra.mxu0 0.0
      %1087 = vmatprep.subr.mxu0 0.0
      %1088 = vmatpush1.msra.mxu0 0.0
      %1089 = vmatprep.subr.mxu0 0.0
      %1090 = vmatpush1.msra.mxu0 0.0
      %1091 = vmatprep.subr.mxu0 0.0
      %1092 = vmatpush1.msra.mxu0 0.0
      %1093 = vmatprep.subr.mxu0 0.0
      %1094 = vmatpush1.msra.mxu0 0.0
      %1095 = vmatprep.subr.mxu0 0.0
      %1096 = vmatpush1.msra.mxu0 0.0
      %1097 = vmatprep.subr.mxu0 0.0
      %1098 = vmatpush1.msra.mxu0 0.0
      %1099 = vmatprep.subr.mxu0 0.0
      %1100 = vmatpush1.msra.mxu0 0.0
      %1101 = vmatprep.subr.mxu0 0.0
      %1102 = vmatpush1.msra.mxu0 0.0
      %1103 = vmatprep.subr.mxu0 0.0
      %1104 = vmatpush1.msra.mxu0 0.0
      %1105 = vmatprep.subr.mxu0 0.0
      %1106 = vmatpush1.msra.mxu0 %v1073
      %1107 = vmatprep.subr.mxu0 0.0
      %1108 = vmatpush2.msra.mxu0 0.0
      %1109 = vmatprep.subr.mxu0 0.0
      %1110 = vmatpush2.msra.mxu0 0.0
      %1111 = vmatprep.subr.mxu0 0.0
      %1112 = vmatpush2.msra.mxu0 0.0
      %1113 = vmatprep.subr.mxu0 0.0
      %1114 = vmatpush2.msra.mxu0 0.0
      %1115 = vmatprep.subr.mxu0 0.0
      %1116 = vmatpush2.msra.mxu0 0.0
      %1117 = vmatprep.subr.mxu0 0.0
      %1118 = vmatpush2.msra.mxu0 0.0
      %1119 = vmatprep.subr.mxu0 0.0
      %1120 = vmatpush2.msra.mxu0 0.0
      %1121 = vmatprep.subr.mxu0 0.0
      %1122 = vmatpush2.msra.mxu0 0.0
      %1123 = vmatprep.subr.mxu0 0.0
      %1124 = vmatpush2.msra.mxu0 0.0
      %1125 = vmatprep.subr.mxu0 0.0
      %1126 = vmatpush2.msra.mxu0 0.0
      %1127 = vmatprep.subr.mxu0 0.0
      %1128 = vmatpush2.msra.mxu0 0.0
      %1129 = vmatprep.subr.mxu0 0.0
      %1130 = vmatpush2.msra.mxu0 0.0
      %1131 = vmatprep.subr.mxu0 0.0
      %1132 = vmatpush2.msra.mxu0 0.0
      %1133 = vmatprep.subr.mxu0 0.0
      %1134 = vmatpush2.msra.mxu0 0.0
      %1135 = vmatprep.subr.mxu0 0.0
      %1136 = vmatpush2.msra.mxu0 0.0
      %1137 = vmatprep.subr.mxu0 0.0
      %1138 = vmatpush2.msra.mxu0 0.0
      %1139 = vmatprep.mubr.f32.mxu0 0.0
      %1140 = vmatmul.mubr.f32.gmra.mxu0 %v1039
      %v1141 = vpop.f32.mrf.mxu0
      %v1142 = vadd.f32 0.0, %v1141
      %v1143 = vpop.f32.mrf.mxu0
      %1144 = vmatprep.mubr.f32.mxu0 0.0
      %1145 = vmatmul.mubr.f32.gmra.mxu0 %v1041
      %v1146 = vpop.f32.mrf.mxu0
      %v1147 = vadd.f32 0.0, %v1146
      %v1148 = vpop.f32.mrf.mxu0
      %1149 = vmatprep.mubr.f32.mxu0 0.0
      %1150 = vmatmul.mubr.f32.gmra.mxu0 %v1043
      %v1151 = vpop.f32.mrf.mxu0
      %v1152 = vadd.f32 0.0, %v1151
      %v1153 = vpop.f32.mrf.mxu0
      %1154 = vmatprep.mubr.f32.mxu0 0.0
      %1155 = vmatmul.mubr.f32.gmra.mxu0 %v1045
      %v1156 = vpop.f32.mrf.mxu0
      %v1157 = vadd.f32 0.0, %v1156
      %v1158 = vpop.f32.mrf.mxu0
      %1159 = vmatprep.mubr.f32.mxu0 0.0
      %1160 = vmatmul.mubr.f32.gmra.mxu0 %v1047
      %v1161 = vpop.f32.mrf.mxu0
      %v1162 = vadd.f32 0.0, %v1161
      %v1163 = vpop.f32.mrf.mxu0
      %1164 = vmatprep.mubr.f32.mxu0 0.0
      %1165 = vmatmul.mubr.f32.gmra.mxu0 %v1049
      %v1166 = vpop.f32.mrf.mxu0
      %v1167 = vadd.f32 0.0, %v1166
      %v1168 = vpop.f32.mrf.mxu0
      %1169 = vmatprep.mubr.f32.mxu0 0.0
      %1170 = vmatmul.mubr.f32.gmra.mxu0 %v1051
      %v1171 = vpop.f32.mrf.mxu0
      %v1172 = vadd.f32 0.0, %v1171
      %v1173 = vpop.f32.mrf.mxu0
      %1174 = vmatprep.mubr.f32.mxu0 0.0
      %1175 = vmatmul.mubr.f32.gmra.mxu0 %v1053
      %v1176 = vpop.f32.mrf.mxu0
      %v1177 = vadd.f32 0.0, %v1176
      %v1178 = vpop.f32.mrf.mxu0
      %1179 = vmatprep.mubr.f32.mxu0 0.0
      %1180 = vmatmul.mubr.f32.gmra.mxu0 %v1055
      %v1181 = vpop.f32.mrf.mxu0
      %v1182 = vadd.f32 0.0, %v1181
      %v1183 = vpop.f32.mrf.mxu0
      %1184 = vmatprep.mubr.f32.mxu0 0.0
      %1185 = vmatmul.mubr.f32.gmra.mxu0 %v1057
      %v1186 = vpop.f32.mrf.mxu0
      %v1187 = vadd.f32 0.0, %v1186
      %v1188 = vpop.f32.mrf.mxu0
      %1189 = vmatprep.mubr.f32.mxu0 0.0
      %1190 = vmatmul.mubr.f32.gmra.mxu0 %v1059
      %v1191 = vpop.f32.mrf.mxu0
      %v1192 = vadd.f32 0.0, %v1191
      %v1193 = vpop.f32.mrf.mxu0
      %1194 = vmatprep.mubr.f32.mxu0 0.0
      %1195 = vmatmul.mubr.f32.gmra.mxu0 %v1061
      %v1196 = vpop.f32.mrf.mxu0
      %v1197 = vadd.f32 0.0, %v1196
      %v1198 = vpop.f32.mrf.mxu0
      %1199 = vmatprep.mubr.f32.mxu0 0.0
      %1200 = vmatmul.mubr.f32.gmra.mxu0 %v1063
      %v1201 = vpop.f32.mrf.mxu0
      %v1202 = vadd.f32 0.0, %v1201
      %v1203 = vpop.f32.mrf.mxu0
      %1204 = vmatprep.mubr.f32.mxu0 0.0
      %1205 = vmatmul.mubr.f32.gmra.mxu0 %v1065
      %v1206 = vpop.f32.mrf.mxu0
      %v1207 = vadd.f32 0.0, %v1206
      %v1208 = vpop.f32.mrf.mxu0
      %1209 = vmatprep.mubr.f32.mxu0 0.0
      %1210 = vmatmul.mubr.f32.gmra.mxu0 %v1067
      %v1211 = vpop.f32.mrf.mxu0
      %v1212 = vadd.f32 0.0, %v1211
      %v1213 = vpop.f32.mrf.mxu0
      %1214 = vmatprep.mubr.f32.mxu0 0.0
      %1215 = vmatmul.mubr.f32.gmra.mxu0 %v1069
      %v1216 = vpop.f32.mrf.mxu0
      %v1217 = vadd.f32 0.0, %v1216
      %v1218 = vpop.f32.mrf.mxu0
      %1219 = vdwg.mxu0
      %v1220 = vsel %vm1038, %v958, 0
      %v1222 = vsel %vm1038, %v910, 0
      %v1224 = vsel %vm1038, %v959, 0
      %v1226 = vsel %vm1038, %v913, 0
      %v1228 = vsel %vm1038, %v960, 0
      %v1230 = vsel %vm1038, %v916, 0
      %v1232 = vsel %vm1038, %v961, 0
      %v1234 = vsel %vm1038, %v919, 0
      %v1236 = vsel %vm1038, %v962, 0
      %v1238 = vsel %vm1038, %v922, 0
      %v1240 = vsel %vm1038, %v963, 0
      %v1242 = vsel %vm1038, %v925, 0
      %v1244 = vsel %vm1038, %v964, 0
      %v1246 = vsel %vm1038, %v928, 0
      %v1248 = vsel %vm1038, %v965, 0
      %v1250 = vsel %vm1038, %v931, 0
      %v1253 = vsel %vm1071, %v978, 0
      %1255 = vmatprep.subr.mxu0 0.0
      %1256 = vmatpush1.msra.mxu0 0.0
      %1257 = vmatprep.subr.mxu0 0.0
      %1258 = vmatpush1.msra.mxu0 0.0
      %1259 = vmatprep.subr.mxu0 0.0
      %1260 = vmatpush1.msra.mxu0 0.0
      %1261 = vmatprep.subr.mxu0 0.0
      %1262 = vmatpush1.msra.mxu0 0.0
      %1263 = vmatprep.subr.mxu0 0.0
      %1264 = vmatpush1.msra.mxu0 0.0
      %1265 = vmatprep.subr.mxu0 0.0
      %1266 = vmatpush1.msra.mxu0 0.0
      %1267 = vmatprep.subr.mxu0 0.0
      %1268 = vmatpush1.msra.mxu0 0.0
      %1269 = vmatprep.subr.mxu0 0.0
      %1270 = vmatpush1.msra.mxu0 0.0
      %1271 = vmatprep.subr.mxu0 0.0
      %1272 = vmatpush1.msra.mxu0 0.0
      %1273 = vmatprep.subr.mxu0 0.0
      %1274 = vmatpush1.msra.mxu0 0.0
      %1275 = vmatprep.subr.mxu0 0.0
      %1276 = vmatpush1.msra.mxu0 0.0
      %1277 = vmatprep.subr.mxu0 0.0
      %1278 = vmatpush1.msra.mxu0 0.0
      %1279 = vmatprep.subr.mxu0 0.0
      %1280 = vmatpush1.msra.mxu0 0.0
      %1281 = vmatprep.subr.mxu0 0.0
      %1282 = vmatpush1.msra.mxu0 0.0
      %1283 = vmatprep.subr.mxu0 0.0
      %1284 = vmatpush1.msra.mxu0 0.0
      %1285 = vmatprep.subr.mxu0 0.0
      %1286 = vmatpush1.msra.mxu0 %v1253
      %1287 = vmatprep.subr.mxu0 0.0
      %1288 = vmatpush2.msra.mxu0 0.0
      %1289 = vmatprep.subr.mxu0 0.0
      %1290 = vmatpush2.msra.mxu0 0.0
      %1291 = vmatprep.subr.mxu0 0.0
      %1292 = vmatpush2.msra.mxu0 0.0
      %1293 = vmatprep.subr.mxu0 0.0
      %1294 = vmatpush2.msra.mxu0 0.0
      %1295 = vmatprep.subr.mxu0 0.0
      %1296 = vmatpush2.msra.mxu0 0.0
      %1297 = vmatprep.subr.mxu0 0.0
      %1298 = vmatpush2.msra.mxu0 0.0
      %1299 = vmatprep.subr.mxu0 0.0
      %1300 = vmatpush2.msra.mxu0 0.0
      %1301 = vmatprep.subr.mxu0 0.0
      %1302 = vmatpush2.msra.mxu0 0.0
      %1303 = vmatprep.subr.mxu0 0.0
      %1304 = vmatpush2.msra.mxu0 0.0
      %1305 = vmatprep.subr.mxu0 0.0
      %1306 = vmatpush2.msra.mxu0 0.0
      %1307 = vmatprep.subr.mxu0 0.0
      %1308 = vmatpush2.msra.mxu0 0.0
      %1309 = vmatprep.subr.mxu0 0.0
      %1310 = vmatpush2.msra.mxu0 0.0
      %1311 = vmatprep.subr.mxu0 0.0
      %1312 = vmatpush2.msra.mxu0 0.0
      %1313 = vmatprep.subr.mxu0 0.0
      %1314 = vmatpush2.msra.mxu0 0.0
      %1315 = vmatprep.subr.mxu0 0.0
      %1316 = vmatpush2.msra.mxu0 0.0
      %1317 = vmatprep.subr.mxu0 0.0
      %1318 = vmatpush2.msra.mxu0 0.0
      %1319 = vmatprep.mubr.f32.mxu0 0.0
      %1320 = vmatmul.mubr.f32.gmra.mxu0 %v1220
      %v1321 = vpop.f32.mrf.mxu0
      %v1322 = vadd.f32 %v1142, %v1321
      %v1323 = vpop.f32.mrf.mxu0
      %1324 = vmatprep.mubr.f32.mxu0 0.0
      %1325 = vmatmul.mubr.f32.gmra.mxu0 %v1222
      %v1326 = vpop.f32.mrf.mxu0
      %v1327 = vadd.f32 %v1147, %v1326
      %v1328 = vpop.f32.mrf.mxu0
      %1329 = vmatprep.mubr.f32.mxu0 0.0
      %1330 = vmatmul.mubr.f32.gmra.mxu0 %v1224
      %v1331 = vpop.f32.mrf.mxu0
      %v1332 = vadd.f32 %v1152, %v1331
      %v1333 = vpop.f32.mrf.mxu0
      %1334 = vmatprep.mubr.f32.mxu0 0.0
      %1335 = vmatmul.mubr.f32.gmra.mxu0 %v1226
      %v1336 = vpop.f32.mrf.mxu0
      %v1337 = vadd.f32 %v1157, %v1336
      %v1338 = vpop.f32.mrf.mxu0
      %1339 = vmatprep.mubr.f32.mxu0 0.0
      %1340 = vmatmul.mubr.f32.gmra.mxu0 %v1228
      %v1341 = vpop.f32.mrf.mxu0
      %v1342 = vadd.f32 %v1162, %v1341
      %v1343 = vpop.f32.mrf.mxu0
      %1344 = vmatprep.mubr.f32.mxu0 0.0
      %1345 = vmatmul.mubr.f32.gmra.mxu0 %v1230
      %v1346 = vpop.f32.mrf.mxu0
      %v1347 = vadd.f32 %v1167, %v1346
      %v1348 = vpop.f32.mrf.mxu0
      %1349 = vmatprep.mubr.f32.mxu0 0.0
      %1350 = vmatmul.mubr.f32.gmra.mxu0 %v1232
      %v1351 = vpop.f32.mrf.mxu0
      %v1352 = vadd.f32 %v1172, %v1351
      %v1353 = vpop.f32.mrf.mxu0
      %1354 = vmatprep.mubr.f32.mxu0 0.0
      %1355 = vmatmul.mubr.f32.gmra.mxu0 %v1234
      %v1356 = vpop.f32.mrf.mxu0
      %v1357 = vadd.f32 %v1177, %v1356
      %v1358 = vpop.f32.mrf.mxu0
      %1359 = vmatprep.mubr.f32.mxu0 0.0
      %1360 = vmatmul.mubr.f32.gmra.mxu0 %v1236
      %v1361 = vpop.f32.mrf.mxu0
      %v1362 = vadd.f32 %v1182, %v1361
      %v1363 = vpop.f32.mrf.mxu0
      %1364 = vmatprep.mubr.f32.mxu0 0.0
      %1365 = vmatmul.mubr.f32.gmra.mxu0 %v1238
      %v1366 = vpop.f32.mrf.mxu0
      %v1367 = vadd.f32 %v1187, %v1366
      %v1368 = vpop.f32.mrf.mxu0
      %1369 = vmatprep.mubr.f32.mxu0 0.0
      %1370 = vmatmul.mubr.f32.gmra.mxu0 %v1240
      %v1371 = vpop.f32.mrf.mxu0
      %v1372 = vadd.f32 %v1192, %v1371
      %v1373 = vpop.f32.mrf.mxu0
      %1374 = vmatprep.mubr.f32.mxu0 0.0
      %1375 = vmatmul.mubr.f32.gmra.mxu0 %v1242
      %v1376 = vpop.f32.mrf.mxu0
      %v1377 = vadd.f32 %v1197, %v1376
      %v1378 = vpop.f32.mrf.mxu0
      %1379 = vmatprep.mubr.f32.mxu0 0.0
      %1380 = vmatmul.mubr.f32.gmra.mxu0 %v1244
      %v1381 = vpop.f32.mrf.mxu0
      %v1382 = vadd.f32 %v1202, %v1381
      %v1383 = vpop.f32.mrf.mxu0
      %1384 = vmatprep.mubr.f32.mxu0 0.0
      %1385 = vmatmul.mubr.f32.gmra.mxu0 %v1246
      %v1386 = vpop.f32.mrf.mxu0
      %v1387 = vadd.f32 %v1207, %v1386
      %v1388 = vpop.f32.mrf.mxu0
      %1389 = vmatprep.mubr.f32.mxu0 0.0
      %1390 = vmatmul.mubr.f32.gmra.mxu0 %v1248
      %v1391 = vpop.f32.mrf.mxu0
      %v1392 = vadd.f32 %v1212, %v1391
      %v1393 = vpop.f32.mrf.mxu0
      %1394 = vmatprep.mubr.f32.mxu0 0.0
      %1395 = vmatmul.mubr.f32.gmra.mxu0 %v1250
      %v1396 = vpop.f32.mrf.mxu0
      %v1397 = vadd.f32 %v1217, %v1396
      %v1398 = vpop.f32.mrf.mxu0
      %1399 = vdwg.mxu0
      %vm1400 = vcmask 1045504
      %v1401 = vrot.slane %v958, 2
      %v1402 = vrot.slane %v910, 2
      %v1403 = vsel %vm1400, %v1401, %v1402
      %v1404 = vrot.slane %v968, 2
      %v1405 = vsel %vm1400, %v1402, %v1404
      %v1406 = vrot.slane %v959, 2
      %v1407 = vrot.slane %v913, 2
      %v1408 = vsel %vm1400, %v1406, %v1407
      %v1409 = vrot.slane %v969, 2
      %v1410 = vsel %vm1400, %v1407, %v1409
      %v1411 = vrot.slane %v960, 2
      %v1412 = vrot.slane %v916, 2
      %v1413 = vsel %vm1400, %v1411, %v1412
      %v1414 = vrot.slane %v970, 2
      %v1415 = vsel %vm1400, %v1412, %v1414
      %v1416 = vrot.slane %v961, 2
      %v1417 = vrot.slane %v919, 2
      %v1418 = vsel %vm1400, %v1416, %v1417
      %v1419 = vrot.slane %v971, 2
      %v1420 = vsel %vm1400, %v1417, %v1419
      %v1421 = vrot.slane %v962, 2
      %v1422 = vrot.slane %v922, 2
      %v1423 = vsel %vm1400, %v1421, %v1422
      %v1424 = vrot.slane %v972, 2
      %v1425 = vsel %vm1400, %v1422, %v1424
      %v1426 = vrot.slane %v963, 2
      %v1427 = vrot.slane %v925, 2
      %v1428 = vsel %vm1400, %v1426, %v1427
      %v1429 = vrot.slane %v973, 2
      %v1430 = vsel %vm1400, %v1427, %v1429
      %v1431 = vrot.slane %v964, 2
      %v1432 = vrot.slane %v928, 2
      %v1433 = vsel %vm1400, %v1431, %v1432
      %v1434 = vrot.slane %v974, 2
      %v1435 = vsel %vm1400, %v1432, %v1434
      %v1436 = vrot.slane %v965, 2
      %v1437 = vrot.slane %v931, 2
      %v1438 = vsel %vm1400, %v1436, %v1437
      %v1439 = vrot.slane %v975, 2
      %v1440 = vsel %vm1400, %v1437, %v1439
      %s1441 = scalar_lea.vmem %s5, 4
      %v1442 = vld [vmem:[%s1441] sm:$0x3]
      %v1443 = vsel %vm1038, %v1403, 0
      %v1445 = vsel %vm1038, %v1405, 0
      %v1447 = vsel %vm1038, %v1408, 0
      %v1449 = vsel %vm1038, %v1410, 0
      %v1451 = vsel %vm1038, %v1413, 0
      %v1453 = vsel %vm1038, %v1415, 0
      %v1455 = vsel %vm1038, %v1418, 0
      %v1457 = vsel %vm1038, %v1420, 0
      %v1459 = vsel %vm1038, %v1423, 0
      %v1461 = vsel %vm1038, %v1425, 0
      %v1463 = vsel %vm1038, %v1428, 0
      %v1465 = vsel %vm1038, %v1430, 0
      %v1467 = vsel %vm1038, %v1433, 0
      %v1469 = vsel %vm1038, %v1435, 0
      %v1471 = vsel %vm1038, %v1438, 0
      %v1473 = vsel %vm1038, %v1440, 0
      %v1476 = vsel %vm1071, %v1442, 0
      %1478 = vmatprep.subr.mxu0 0.0
      %1479 = vmatpush1.msra.mxu0 0.0
      %1480 = vmatprep.subr.mxu0 0.0
      %1481 = vmatpush1.msra.mxu0 0.0
      %1482 = vmatprep.subr.mxu0 0.0
      %1483 = vmatpush1.msra.mxu0 0.0
      %1484 = vmatprep.subr.mxu0 0.0
      %1485 = vmatpush1.msra.mxu0 0.0
      %1486 = vmatprep.subr.mxu0 0.0
      %1487 = vmatpush1.msra.mxu0 0.0
      %1488 = vmatprep.subr.mxu0 0.0
      %1489 = vmatpush1.msra.mxu0 0.0
      %1490 = vmatprep.subr.mxu0 0.0
      %1491 = vmatpush1.msra.mxu0 0.0
      %1492 = vmatprep.subr.mxu0 0.0
      %1493 = vmatpush1.msra.mxu0 0.0
      %1494 = vmatprep.subr.mxu0 0.0
      %1495 = vmatpush1.msra.mxu0 0.0
      %1496 = vmatprep.subr.mxu0 0.0
      %1497 = vmatpush1.msra.mxu0 0.0
      %1498 = vmatprep.subr.mxu0 0.0
      %1499 = vmatpush1.msra.mxu0 0.0
      %1500 = vmatprep.subr.mxu0 0.0
      %1501 = vmatpush1.msra.mxu0 0.0
      %1502 = vmatprep.subr.mxu0 0.0
      %1503 = vmatpush1.msra.mxu0 0.0
      %1504 = vmatprep.subr.mxu0 0.0
      %1505 = vmatpush1.msra.mxu0 0.0
      %1506 = vmatprep.subr.mxu0 0.0
      %1507 = vmatpush1.msra.mxu0 0.0
      %1508 = vmatprep.subr.mxu0 0.0
      %1509 = vmatpush1.msra.mxu0 %v1476
      %1510 = vmatprep.subr.mxu0 0.0
      %1511 = vmatpush2.msra.mxu0 0.0
      %1512 = vmatprep.subr.mxu0 0.0
      %1513 = vmatpush2.msra.mxu0 0.0
      %1514 = vmatprep.subr.mxu0 0.0
      %1515 = vmatpush2.msra.mxu0 0.0
      %1516 = vmatprep.subr.mxu0 0.0
      %1517 = vmatpush2.msra.mxu0 0.0
      %1518 = vmatprep.subr.mxu0 0.0
      %1519 = vmatpush2.msra.mxu0 0.0
      %1520 = vmatprep.subr.mxu0 0.0
      %1521 = vmatpush2.msra.mxu0 0.0
      %1522 = vmatprep.subr.mxu0 0.0
      %1523 = vmatpush2.msra.mxu0 0.0
      %1524 = vmatprep.subr.mxu0 0.0
      %1525 = vmatpush2.msra.mxu0 0.0
      %1526 = vmatprep.subr.mxu0 0.0
      %1527 = vmatpush2.msra.mxu0 0.0
      %1528 = vmatprep.subr.mxu0 0.0
      %1529 = vmatpush2.msra.mxu0 0.0
      %1530 = vmatprep.subr.mxu0 0.0
      %1531 = vmatpush2.msra.mxu0 0.0
      %1532 = vmatprep.subr.mxu0 0.0
      %1533 = vmatpush2.msra.mxu0 0.0
      %1534 = vmatprep.subr.mxu0 0.0
      %1535 = vmatpush2.msra.mxu0 0.0
      %1536 = vmatprep.subr.mxu0 0.0
      %1537 = vmatpush2.msra.mxu0 0.0
      %1538 = vmatprep.subr.mxu0 0.0
      %1539 = vmatpush2.msra.mxu0 0.0
      %1540 = vmatprep.subr.mxu0 0.0
      %1541 = vmatpush2.msra.mxu0 0.0
      %1542 = vmatprep.mubr.f32.mxu0 0.0
      %1543 = vmatmul.mubr.f32.gmra.mxu0 %v1443
      %v1544 = vpop.f32.mrf.mxu0
      %v1545 = vadd.f32 0.0, %v1544
      %v1546 = vpop.f32.mrf.mxu0
      %1547 = vmatprep.mubr.f32.mxu0 0.0
      %1548 = vmatmul.mubr.f32.gmra.mxu0 %v1445
      %v1549 = vpop.f32.mrf.mxu0
      %v1550 = vadd.f32 0.0, %v1549
      %v1551 = vpop.f32.mrf.mxu0
      %1552 = vmatprep.mubr.f32.mxu0 0.0
      %1553 = vmatmul.mubr.f32.gmra.mxu0 %v1447
      %v1554 = vpop.f32.mrf.mxu0
      %v1555 = vadd.f32 0.0, %v1554
      %v1556 = vpop.f32.mrf.mxu0
      %1557 = vmatprep.mubr.f32.mxu0 0.0
      %1558 = vmatmul.mubr.f32.gmra.mxu0 %v1449
      %v1559 = vpop.f32.mrf.mxu0
      %v1560 = vadd.f32 0.0, %v1559
      %v1561 = vpop.f32.mrf.mxu0
      %1562 = vmatprep.mubr.f32.mxu0 0.0
      %1563 = vmatmul.mubr.f32.gmra.mxu0 %v1451
      %v1564 = vpop.f32.mrf.mxu0
      %v1565 = vadd.f32 0.0, %v1564
      %v1566 = vpop.f32.mrf.mxu0
      %1567 = vmatprep.mubr.f32.mxu0 0.0
      %1568 = vmatmul.mubr.f32.gmra.mxu0 %v1453
      %v1569 = vpop.f32.mrf.mxu0
      %v1570 = vadd.f32 0.0, %v1569
      %v1571 = vpop.f32.mrf.mxu0
      %1572 = vmatprep.mubr.f32.mxu0 0.0
      %1573 = vmatmul.mubr.f32.gmra.mxu0 %v1455
      %v1574 = vpop.f32.mrf.mxu0
      %v1575 = vadd.f32 0.0, %v1574
      %v1576 = vpop.f32.mrf.mxu0
      %1577 = vmatprep.mubr.f32.mxu0 0.0
      %1578 = vmatmul.mubr.f32.gmra.mxu0 %v1457
      %v1579 = vpop.f32.mrf.mxu0
      %v1580 = vadd.f32 0.0, %v1579
      %v1581 = vpop.f32.mrf.mxu0
      %1582 = vmatprep.mubr.f32.mxu0 0.0
      %1583 = vmatmul.mubr.f32.gmra.mxu0 %v1459
      %v1584 = vpop.f32.mrf.mxu0
      %v1585 = vadd.f32 0.0, %v1584
      %v1586 = vpop.f32.mrf.mxu0
      %1587 = vmatprep.mubr.f32.mxu0 0.0
      %1588 = vmatmul.mubr.f32.gmra.mxu0 %v1461
      %v1589 = vpop.f32.mrf.mxu0
      %v1590 = vadd.f32 0.0, %v1589
      %v1591 = vpop.f32.mrf.mxu0
      %1592 = vmatprep.mubr.f32.mxu0 0.0
      %1593 = vmatmul.mubr.f32.gmra.mxu0 %v1463
      %v1594 = vpop.f32.mrf.mxu0
      %v1595 = vadd.f32 0.0, %v1594
      %v1596 = vpop.f32.mrf.mxu0
      %1597 = vmatprep.mubr.f32.mxu0 0.0
      %1598 = vmatmul.mubr.f32.gmra.mxu0 %v1465
      %v1599 = vpop.f32.mrf.mxu0
      %v1600 = vadd.f32 0.0, %v1599
      %v1601 = vpop.f32.mrf.mxu0
      %1602 = vmatprep.mubr.f32.mxu0 0.0
      %1603 = vmatmul.mubr.f32.gmra.mxu0 %v1467
      %v1604 = vpop.f32.mrf.mxu0
      %v1605 = vadd.f32 0.0, %v1604
      %v1606 = vpop.f32.mrf.mxu0
      %1607 = vmatprep.mubr.f32.mxu0 0.0
      %1608 = vmatmul.mubr.f32.gmra.mxu0 %v1469
      %v1609 = vpop.f32.mrf.mxu0
      %v1610 = vadd.f32 0.0, %v1609
      %v1611 = vpop.f32.mrf.mxu0
      %1612 = vmatprep.mubr.f32.mxu0 0.0
      %1613 = vmatmul.mubr.f32.gmra.mxu0 %v1471
      %v1614 = vpop.f32.mrf.mxu0
      %v1615 = vadd.f32 0.0, %v1614
      %v1616 = vpop.f32.mrf.mxu0
      %1617 = vmatprep.mubr.f32.mxu0 0.0
      %1618 = vmatmul.mubr.f32.gmra.mxu0 %v1473
      %v1619 = vpop.f32.mrf.mxu0
      %v1620 = vadd.f32 0.0, %v1619
      %v1621 = vpop.f32.mrf.mxu0
      %1622 = vdwg.mxu0
      %v1623 = vadd.f32 %v1322, %v1545
      %v1624 = vadd.f32 %v1327, %v1550
      %v1625 = vadd.f32 %v1332, %v1555
      %v1626 = vadd.f32 %v1337, %v1560
      %v1627 = vadd.f32 %v1342, %v1565
      %v1628 = vadd.f32 %v1347, %v1570
      %v1629 = vadd.f32 %v1352, %v1575
      %v1630 = vadd.f32 %v1357, %v1580
      %v1631 = vadd.f32 %v1362, %v1585
      %v1632 = vadd.f32 %v1367, %v1590
      %v1633 = vadd.f32 %v1372, %v1595
      %v1634 = vadd.f32 %v1377, %v1600
      %v1635 = vadd.f32 %v1382, %v1605
      %v1636 = vadd.f32 %v1387, %v1610
      %v1637 = vadd.f32 %v1392, %v1615
      %v1638 = vadd.f32 %v1397, %v1620
      %s1639 = scalar_lea.vmem %s5, 6
      %v1640 = vld [vmem:[%s1639] sm:$0x3]
      %v1642 = vsel %vm1038, %v966, 0
      %v1644 = vsel %vm1038, %v934, 0
      %v1647 = vsel %vm1071, %v1640, 0
      %1649 = vmatprep.subr.mxu0 0.0
      %1650 = vmatpush1.msra.mxu0 0.0
      %1651 = vmatprep.subr.mxu0 0.0
      %1652 = vmatpush1.msra.mxu0 0.0
      %1653 = vmatprep.subr.mxu0 0.0
      %1654 = vmatpush1.msra.mxu0 0.0
      %1655 = vmatprep.subr.mxu0 0.0
      %1656 = vmatpush1.msra.mxu0 0.0
      %1657 = vmatprep.subr.mxu0 0.0
      %1658 = vmatpush1.msra.mxu0 0.0
      %1659 = vmatprep.subr.mxu0 0.0
      %1660 = vmatpush1.msra.mxu0 0.0
      %1661 = vmatprep.subr.mxu0 0.0
      %1662 = vmatpush1.msra.mxu0 0.0
      %1663 = vmatprep.subr.mxu0 0.0
      %1664 = vmatpush1.msra.mxu0 0.0
      %1665 = vmatprep.subr.mxu0 0.0
      %1666 = vmatpush1.msra.mxu0 0.0
      %1667 = vmatprep.subr.mxu0 0.0
      %1668 = vmatpush1.msra.mxu0 0.0
      %1669 = vmatprep.subr.mxu0 0.0
      %1670 = vmatpush1.msra.mxu0 0.0
      %1671 = vmatprep.subr.mxu0 0.0
      %1672 = vmatpush1.msra.mxu0 0.0
      %1673 = vmatprep.subr.mxu0 0.0
      %1674 = vmatpush1.msra.mxu0 0.0
      %1675 = vmatprep.subr.mxu0 0.0
      %1676 = vmatpush1.msra.mxu0 0.0
      %1677 = vmatprep.subr.mxu0 0.0
      %1678 = vmatpush1.msra.mxu0 0.0
      %1679 = vmatprep.subr.mxu0 0.0
      %1680 = vmatpush1.msra.mxu0 %v1647
      %1681 = vmatprep.subr.mxu0 0.0
      %1682 = vmatpush2.msra.mxu0 0.0
      %1683 = vmatprep.subr.mxu0 0.0
      %1684 = vmatpush2.msra.mxu0 0.0
      %1685 = vmatprep.subr.mxu0 0.0
      %1686 = vmatpush2.msra.mxu0 0.0
      %1687 = vmatprep.subr.mxu0 0.0
      %1688 = vmatpush2.msra.mxu0 0.0
      %1689 = vmatprep.subr.mxu0 0.0
      %1690 = vmatpush2.msra.mxu0 0.0
      %1691 = vmatprep.subr.mxu0 0.0
      %1692 = vmatpush2.msra.mxu0 0.0
      %1693 = vmatprep.subr.mxu0 0.0
      %1694 = vmatpush2.msra.mxu0 0.0
      %1695 = vmatprep.subr.mxu0 0.0
      %1696 = vmatpush2.msra.mxu0 0.0
      %1697 = vmatprep.subr.mxu0 0.0
      %1698 = vmatpush2.msra.mxu0 0.0
      %1699 = vmatprep.subr.mxu0 0.0
      %1700 = vmatpush2.msra.mxu0 0.0
      %1701 = vmatprep.subr.mxu0 0.0
      %1702 = vmatpush2.msra.mxu0 0.0
      %1703 = vmatprep.subr.mxu0 0.0
      %1704 = vmatpush2.msra.mxu0 0.0
      %1705 = vmatprep.subr.mxu0 0.0
      %1706 = vmatpush2.msra.mxu0 0.0
      %1707 = vmatprep.subr.mxu0 0.0
      %1708 = vmatpush2.msra.mxu0 0.0
      %1709 = vmatprep.subr.mxu0 0.0
      %1710 = vmatpush2.msra.mxu0 0.0
      %1711 = vmatprep.subr.mxu0 0.0
      %1712 = vmatpush2.msra.mxu0 0.0
      %1713 = vmatprep.mubr.f32.mxu0 0.0
      %1714 = vmatmul.mubr.f32.gmra.mxu0 %v1224
      %v1715 = vpop.f32.mrf.mxu0
      %v1716 = vadd.f32 0.0, %v1715
      %v1717 = vpop.f32.mrf.mxu0
      %1718 = vmatprep.mubr.f32.mxu0 0.0
      %1719 = vmatmul.mubr.f32.gmra.mxu0 %v1226
      %v1720 = vpop.f32.mrf.mxu0
      %v1721 = vadd.f32 0.0, %v1720
      %v1722 = vpop.f32.mrf.mxu0
      %1723 = vmatprep.mubr.f32.mxu0 0.0
      %1724 = vmatmul.mubr.f32.gmra.mxu0 %v1228
      %v1725 = vpop.f32.mrf.mxu0
      %v1726 = vadd.f32 0.0, %v1725
      %v1727 = vpop.f32.mrf.mxu0
      %1728 = vmatprep.mubr.f32.mxu0 0.0
      %1729 = vmatmul.mubr.f32.gmra.mxu0 %v1230
      %v1730 = vpop.f32.mrf.mxu0
      %v1731 = vadd.f32 0.0, %v1730
      %v1732 = vpop.f32.mrf.mxu0
      %1733 = vmatprep.mubr.f32.mxu0 0.0
      %1734 = vmatmul.mubr.f32.gmra.mxu0 %v1232
      %v1735 = vpop.f32.mrf.mxu0
      %v1736 = vadd.f32 0.0, %v1735
      %v1737 = vpop.f32.mrf.mxu0
      %1738 = vmatprep.mubr.f32.mxu0 0.0
      %1739 = vmatmul.mubr.f32.gmra.mxu0 %v1234
      %v1740 = vpop.f32.mrf.mxu0
      %v1741 = vadd.f32 0.0, %v1740
      %v1742 = vpop.f32.mrf.mxu0
      %1743 = vmatprep.mubr.f32.mxu0 0.0
      %1744 = vmatmul.mubr.f32.gmra.mxu0 %v1236
      %v1745 = vpop.f32.mrf.mxu0
      %v1746 = vadd.f32 0.0, %v1745
      %v1747 = vpop.f32.mrf.mxu0
      %1748 = vmatprep.mubr.f32.mxu0 0.0
      %1749 = vmatmul.mubr.f32.gmra.mxu0 %v1238
      %v1750 = vpop.f32.mrf.mxu0
      %v1751 = vadd.f32 0.0, %v1750
      %v1752 = vpop.f32.mrf.mxu0
      %1753 = vmatprep.mubr.f32.mxu0 0.0
      %1754 = vmatmul.mubr.f32.gmra.mxu0 %v1240
      %v1755 = vpop.f32.mrf.mxu0
      %v1756 = vadd.f32 0.0, %v1755
      %v1757 = vpop.f32.mrf.mxu0
      %1758 = vmatprep.mubr.f32.mxu0 0.0
      %1759 = vmatmul.mubr.f32.gmra.mxu0 %v1242
      %v1760 = vpop.f32.mrf.mxu0
      %v1761 = vadd.f32 0.0, %v1760
      %v1762 = vpop.f32.mrf.mxu0
      %1763 = vmatprep.mubr.f32.mxu0 0.0
      %1764 = vmatmul.mubr.f32.gmra.mxu0 %v1244
      %v1765 = vpop.f32.mrf.mxu0
      %v1766 = vadd.f32 0.0, %v1765
      %v1767 = vpop.f32.mrf.mxu0
      %1768 = vmatprep.mubr.f32.mxu0 0.0
      %1769 = vmatmul.mubr.f32.gmra.mxu0 %v1246
      %v1770 = vpop.f32.mrf.mxu0
      %v1771 = vadd.f32 0.0, %v1770
      %v1772 = vpop.f32.mrf.mxu0
      %1773 = vmatprep.mubr.f32.mxu0 0.0
      %1774 = vmatmul.mubr.f32.gmra.mxu0 %v1248
      %v1775 = vpop.f32.mrf.mxu0
      %v1776 = vadd.f32 0.0, %v1775
      %v1777 = vpop.f32.mrf.mxu0
      %1778 = vmatprep.mubr.f32.mxu0 0.0
      %1779 = vmatmul.mubr.f32.gmra.mxu0 %v1250
      %v1780 = vpop.f32.mrf.mxu0
      %v1781 = vadd.f32 0.0, %v1780
      %v1782 = vpop.f32.mrf.mxu0
      %1783 = vmatprep.mubr.f32.mxu0 0.0
      %1784 = vmatmul.mubr.f32.gmra.mxu0 %v1642
      %v1785 = vpop.f32.mrf.mxu0
      %v1786 = vadd.f32 0.0, %v1785
      %v1787 = vpop.f32.mrf.mxu0
      %1788 = vmatprep.mubr.f32.mxu0 0.0
      %1789 = vmatmul.mubr.f32.gmra.mxu0 %v1644
      %v1790 = vpop.f32.mrf.mxu0
      %v1791 = vadd.f32 0.0, %v1790
      %v1792 = vpop.f32.mrf.mxu0
      %1793 = vdwg.mxu0
      %v1794 = vadd.f32 %v1623, %v1716
      %v1795 = vadd.f32 %v1624, %v1721
      %v1796 = vadd.f32 %v1625, %v1726
      %v1797 = vadd.f32 %v1626, %v1731
      %v1798 = vadd.f32 %v1627, %v1736
      %v1799 = vadd.f32 %v1628, %v1741
      %v1800 = vadd.f32 %v1629, %v1746
      %v1801 = vadd.f32 %v1630, %v1751
      %v1802 = vadd.f32 %v1631, %v1756
      %v1803 = vadd.f32 %v1632, %v1761
      %v1804 = vadd.f32 %v1633, %v1766
      %v1805 = vadd.f32 %v1634, %v1771
      %v1806 = vadd.f32 %v1635, %v1776
      %v1807 = vadd.f32 %v1636, %v1781
      %v1808 = vadd.f32 %v1637, %v1786
      %v1809 = vadd.f32 %v1638, %v1791
      %v1811 = vrot.slane %v966, 1
      %v1812 = vrot.slane %v934, 1
      %v1813 = vsel %vm995, %v1811, %v1812
      %v1814 = vrot.slane %v976, 1
      %v1815 = vsel %vm995, %v1812, %v1814
      %s1816 = scalar_lea.vmem %s5, 8
      %v1817 = vld [vmem:[%s1816] sm:$0x3]
      %v1818 = vsel %vm1038, %v1813, 0
      %v1820 = vsel %vm1038, %v1815, 0
      %v1823 = vsel %vm1071, %v1817, 0
      %1825 = vmatprep.subr.mxu0 0.0
      %1826 = vmatpush1.msra.mxu0 0.0
      %1827 = vmatprep.subr.mxu0 0.0
      %1828 = vmatpush1.msra.mxu0 0.0
      %1829 = vmatprep.subr.mxu0 0.0
      %1830 = vmatpush1.msra.mxu0 0.0
      %1831 = vmatprep.subr.mxu0 0.0
      %1832 = vmatpush1.msra.mxu0 0.0
      %1833 = vmatprep.subr.mxu0 0.0
      %1834 = vmatpush1.msra.mxu0 0.0
      %1835 = vmatprep.subr.mxu0 0.0
      %1836 = vmatpush1.msra.mxu0 0.0
      %1837 = vmatprep.subr.mxu0 0.0
      %1838 = vmatpush1.msra.mxu0 0.0
      %1839 = vmatprep.subr.mxu0 0.0
      %1840 = vmatpush1.msra.mxu0 0.0
      %1841 = vmatprep.subr.mxu0 0.0
      %1842 = vmatpush1.msra.mxu0 0.0
      %1843 = vmatprep.subr.mxu0 0.0
      %1844 = vmatpush1.msra.mxu0 0.0
      %1845 = vmatprep.subr.mxu0 0.0
      %1846 = vmatpush1.msra.mxu0 0.0
      %1847 = vmatprep.subr.mxu0 0.0
      %1848 = vmatpush1.msra.mxu0 0.0
      %1849 = vmatprep.subr.mxu0 0.0
      %1850 = vmatpush1.msra.mxu0 0.0
      %1851 = vmatprep.subr.mxu0 0.0
      %1852 = vmatpush1.msra.mxu0 0.0
      %1853 = vmatprep.subr.mxu0 0.0
      %1854 = vmatpush1.msra.mxu0 0.0
      %1855 = vmatprep.subr.mxu0 0.0
      %1856 = vmatpush1.msra.mxu0 %v1823
      %1857 = vmatprep.subr.mxu0 0.0
      %1858 = vmatpush2.msra.mxu0 0.0
      %1859 = vmatprep.subr.mxu0 0.0
      %1860 = vmatpush2.msra.mxu0 0.0
      %1861 = vmatprep.subr.mxu0 0.0
      %1862 = vmatpush2.msra.mxu0 0.0
      %1863 = vmatprep.subr.mxu0 0.0
      %1864 = vmatpush2.msra.mxu0 0.0
      %1865 = vmatprep.subr.mxu0 0.0
      %1866 = vmatpush2.msra.mxu0 0.0
      %1867 = vmatprep.subr.mxu0 0.0
      %1868 = vmatpush2.msra.mxu0 0.0
      %1869 = vmatprep.subr.mxu0 0.0
      %1870 = vmatpush2.msra.mxu0 0.0
      %1871 = vmatprep.subr.mxu0 0.0
      %1872 = vmatpush2.msra.mxu0 0.0
      %1873 = vmatprep.subr.mxu0 0.0
      %1874 = vmatpush2.msra.mxu0 0.0
      %1875 = vmatprep.subr.mxu0 0.0
      %1876 = vmatpush2.msra.mxu0 0.0
      %1877 = vmatprep.subr.mxu0 0.0
      %1878 = vmatpush2.msra.mxu0 0.0
      %1879 = vmatprep.subr.mxu0 0.0
      %1880 = vmatpush2.msra.mxu0 0.0
      %1881 = vmatprep.subr.mxu0 0.0
      %1882 = vmatpush2.msra.mxu0 0.0
      %1883 = vmatprep.subr.mxu0 0.0
      %1884 = vmatpush2.msra.mxu0 0.0
      %1885 = vmatprep.subr.mxu0 0.0
      %1886 = vmatpush2.msra.mxu0 0.0
      %1887 = vmatprep.subr.mxu0 0.0
      %1888 = vmatpush2.msra.mxu0 0.0
      %1889 = vmatprep.mubr.f32.mxu0 0.0
      %1890 = vmatmul.mubr.f32.gmra.mxu0 %v1043
      %v1891 = vpop.f32.mrf.mxu0
      %v1892 = vadd.f32 0.0, %v1891
      %v1893 = vpop.f32.mrf.mxu0
      %1894 = vmatprep.mubr.f32.mxu0 0.0
      %1895 = vmatmul.mubr.f32.gmra.mxu0 %v1045
      %v1896 = vpop.f32.mrf.mxu0
      %v1897 = vadd.f32 0.0, %v1896
      %v1898 = vpop.f32.mrf.mxu0
      %1899 = vmatprep.mubr.f32.mxu0 0.0
      %1900 = vmatmul.mubr.f32.gmra.mxu0 %v1047
      %v1901 = vpop.f32.mrf.mxu0
      %v1902 = vadd.f32 0.0, %v1901
      %v1903 = vpop.f32.mrf.mxu0
      %1904 = vmatprep.mubr.f32.mxu0 0.0
      %1905 = vmatmul.mubr.f32.gmra.mxu0 %v1049
      %v1906 = vpop.f32.mrf.mxu0
      %v1907 = vadd.f32 0.0, %v1906
      %v1908 = vpop.f32.mrf.mxu0
      %1909 = vmatprep.mubr.f32.mxu0 0.0
      %1910 = vmatmul.mubr.f32.gmra.mxu0 %v1051
      %v1911 = vpop.f32.mrf.mxu0
      %v1912 = vadd.f32 0.0, %v1911
      %v1913 = vpop.f32.mrf.mxu0
      %1914 = vmatprep.mubr.f32.mxu0 0.0
      %1915 = vmatmul.mubr.f32.gmra.mxu0 %v1053
      %v1916 = vpop.f32.mrf.mxu0
      %v1917 = vadd.f32 0.0, %v1916
      %v1918 = vpop.f32.mrf.mxu0
      %1919 = vmatprep.mubr.f32.mxu0 0.0
      %1920 = vmatmul.mubr.f32.gmra.mxu0 %v1055
      %v1921 = vpop.f32.mrf.mxu0
      %v1922 = vadd.f32 0.0, %v1921
      %v1923 = vpop.f32.mrf.mxu0
      %1924 = vmatprep.mubr.f32.mxu0 0.0
      %1925 = vmatmul.mubr.f32.gmra.mxu0 %v1057
      %v1926 = vpop.f32.mrf.mxu0
      %v1927 = vadd.f32 0.0, %v1926
      %v1928 = vpop.f32.mrf.mxu0
      %1929 = vmatprep.mubr.f32.mxu0 0.0
      %1930 = vmatmul.mubr.f32.gmra.mxu0 %v1059
      %v1931 = vpop.f32.mrf.mxu0
      %v1932 = vadd.f32 0.0, %v1931
      %v1933 = vpop.f32.mrf.mxu0
      %1934 = vmatprep.mubr.f32.mxu0 0.0
      %1935 = vmatmul.mubr.f32.gmra.mxu0 %v1061
      %v1936 = vpop.f32.mrf.mxu0
      %v1937 = vadd.f32 0.0, %v1936
      %v1938 = vpop.f32.mrf.mxu0
      %1939 = vmatprep.mubr.f32.mxu0 0.0
      %1940 = vmatmul.mubr.f32.gmra.mxu0 %v1063
      %v1941 = vpop.f32.mrf.mxu0
      %v1942 = vadd.f32 0.0, %v1941
      %v1943 = vpop.f32.mrf.mxu0
      %1944 = vmatprep.mubr.f32.mxu0 0.0
      %1945 = vmatmul.mubr.f32.gmra.mxu0 %v1065
      %v1946 = vpop.f32.mrf.mxu0
      %v1947 = vadd.f32 0.0, %v1946
      %v1948 = vpop.f32.mrf.mxu0
      %1949 = vmatprep.mubr.f32.mxu0 0.0
      %1950 = vmatmul.mubr.f32.gmra.mxu0 %v1067
      %v1951 = vpop.f32.mrf.mxu0
      %v1952 = vadd.f32 0.0, %v1951
      %v1953 = vpop.f32.mrf.mxu0
      %1954 = vmatprep.mubr.f32.mxu0 0.0
      %1955 = vmatmul.mubr.f32.gmra.mxu0 %v1069
      %v1956 = vpop.f32.mrf.mxu0
      %v1957 = vadd.f32 0.0, %v1956
      %v1958 = vpop.f32.mrf.mxu0
      %1959 = vmatprep.mubr.f32.mxu0 0.0
      %1960 = vmatmul.mubr.f32.gmra.mxu0 %v1818
      %v1961 = vpop.f32.mrf.mxu0
      %v1962 = vadd.f32 0.0, %v1961
      %v1963 = vpop.f32.mrf.mxu0
      %1964 = vmatprep.mubr.f32.mxu0 0.0
      %1965 = vmatmul.mubr.f32.gmra.mxu0 %v1820
      %v1966 = vpop.f32.mrf.mxu0
      %v1967 = vadd.f32 0.0, %v1966
      %v1968 = vpop.f32.mrf.mxu0
      %1969 = vdwg.mxu0
      %v1970 = vadd.f32 %v1794, %v1892
      %v1971 = vadd.f32 %v1795, %v1897
      %v1972 = vadd.f32 %v1796, %v1902
      %v1973 = vadd.f32 %v1797, %v1907
      %v1974 = vadd.f32 %v1798, %v1912
      %v1975 = vadd.f32 %v1799, %v1917
      %v1976 = vadd.f32 %v1800, %v1922
      %v1977 = vadd.f32 %v1801, %v1927
      %v1978 = vadd.f32 %v1802, %v1932
      %v1979 = vadd.f32 %v1803, %v1937
      %v1980 = vadd.f32 %v1804, %v1942
      %v1981 = vadd.f32 %v1805, %v1947
      %v1982 = vadd.f32 %v1806, %v1952
      %v1983 = vadd.f32 %v1807, %v1957
      %v1984 = vadd.f32 %v1808, %v1962
      %v1985 = vadd.f32 %v1809, %v1967
      %v1986 = vrot.slane %v966, 2
      %v1987 = vrot.slane %v934, 2
      %v1988 = vsel %vm1400, %v1986, %v1987
      %v1989 = vrot.slane %v976, 2
      %v1990 = vsel %vm1400, %v1987, %v1989
      %s1991 = scalar_lea.vmem %s5, 10
      %v1992 = vld [vmem:[%s1991] sm:$0x3]
      %v1993 = vsel %vm1038, %v1988, 0
      %v1995 = vsel %vm1038, %v1990, 0
      %v1998 = vsel %vm1071, %v1992, 0
      %2000 = vmatprep.subr.mxu0 0.0
      %2001 = vmatpush1.msra.mxu0 0.0
      %2002 = vmatprep.subr.mxu0 0.0
      %2003 = vmatpush1.msra.mxu0 0.0
      %2004 = vmatprep.subr.mxu0 0.0
      %2005 = vmatpush1.msra.mxu0 0.0
      %2006 = vmatprep.subr.mxu0 0.0
      %2007 = vmatpush1.msra.mxu0 0.0
      %2008 = vmatprep.subr.mxu0 0.0
      %2009 = vmatpush1.msra.mxu0 0.0
      %2010 = vmatprep.subr.mxu0 0.0
      %2011 = vmatpush1.msra.mxu0 0.0
      %2012 = vmatprep.subr.mxu0 0.0
      %2013 = vmatpush1.msra.mxu0 0.0
      %2014 = vmatprep.subr.mxu0 0.0
      %2015 = vmatpush1.msra.mxu0 0.0
      %2016 = vmatprep.subr.mxu0 0.0
      %2017 = vmatpush1.msra.mxu0 0.0
      %2018 = vmatprep.subr.mxu0 0.0
      %2019 = vmatpush1.msra.mxu0 0.0
      %2020 = vmatprep.subr.mxu0 0.0
      %2021 = vmatpush1.msra.mxu0 0.0
      %2022 = vmatprep.subr.mxu0 0.0
      %2023 = vmatpush1.msra.mxu0 0.0
      %2024 = vmatprep.subr.mxu0 0.0
      %2025 = vmatpush1.msra.mxu0 0.0
      %2026 = vmatprep.subr.mxu0 0.0
      %2027 = vmatpush1.msra.mxu0 0.0
      %2028 = vmatprep.subr.mxu0 0.0
      %2029 = vmatpush1.msra.mxu0 0.0
      %2030 = vmatprep.subr.mxu0 0.0
      %2031 = vmatpush1.msra.mxu0 %v1998
      %2032 = vmatprep.subr.mxu0 0.0
      %2033 = vmatpush2.msra.mxu0 0.0
      %2034 = vmatprep.subr.mxu0 0.0
      %2035 = vmatpush2.msra.mxu0 0.0
      %2036 = vmatprep.subr.mxu0 0.0
      %2037 = vmatpush2.msra.mxu0 0.0
      %2038 = vmatprep.subr.mxu0 0.0
      %2039 = vmatpush2.msra.mxu0 0.0
      %2040 = vmatprep.subr.mxu0 0.0
      %2041 = vmatpush2.msra.mxu0 0.0
      %2042 = vmatprep.subr.mxu0 0.0
      %2043 = vmatpush2.msra.mxu0 0.0
      %2044 = vmatprep.subr.mxu0 0.0
      %2045 = vmatpush2.msra.mxu0 0.0
      %2046 = vmatprep.subr.mxu0 0.0
      %2047 = vmatpush2.msra.mxu0 0.0
      %2048 = vmatprep.subr.mxu0 0.0
      %2049 = vmatpush2.msra.mxu0 0.0
      %2050 = vmatprep.subr.mxu0 0.0
      %2051 = vmatpush2.msra.mxu0 0.0
      %2052 = vmatprep.subr.mxu0 0.0
      %2053 = vmatpush2.msra.mxu0 0.0
      %2054 = vmatprep.subr.mxu0 0.0
      %2055 = vmatpush2.msra.mxu0 0.0
      %2056 = vmatprep.subr.mxu0 0.0
      %2057 = vmatpush2.msra.mxu0 0.0
      %2058 = vmatprep.subr.mxu0 0.0
      %2059 = vmatpush2.msra.mxu0 0.0
      %2060 = vmatprep.subr.mxu0 0.0
      %2061 = vmatpush2.msra.mxu0 0.0
      %2062 = vmatprep.subr.mxu0 0.0
      %2063 = vmatpush2.msra.mxu0 0.0
      %2064 = vmatprep.mubr.f32.mxu0 0.0
      %2065 = vmatmul.mubr.f32.gmra.mxu0 %v1447
      %v2066 = vpop.f32.mrf.mxu0
      %v2067 = vadd.f32 0.0, %v2066
      %v2068 = vpop.f32.mrf.mxu0
      %2069 = vmatprep.mubr.f32.mxu0 0.0
      %2070 = vmatmul.mubr.f32.gmra.mxu0 %v1449
      %v2071 = vpop.f32.mrf.mxu0
      %v2072 = vadd.f32 0.0, %v2071
      %v2073 = vpop.f32.mrf.mxu0
      %2074 = vmatprep.mubr.f32.mxu0 0.0
      %2075 = vmatmul.mubr.f32.gmra.mxu0 %v1451
      %v2076 = vpop.f32.mrf.mxu0
      %v2077 = vadd.f32 0.0, %v2076
      %v2078 = vpop.f32.mrf.mxu0
      %2079 = vmatprep.mubr.f32.mxu0 0.0
      %2080 = vmatmul.mubr.f32.gmra.mxu0 %v1453
      %v2081 = vpop.f32.mrf.mxu0
      %v2082 = vadd.f32 0.0, %v2081
      %v2083 = vpop.f32.mrf.mxu0
      %2084 = vmatprep.mubr.f32.mxu0 0.0
      %2085 = vmatmul.mubr.f32.gmra.mxu0 %v1455
      %v2086 = vpop.f32.mrf.mxu0
      %v2087 = vadd.f32 0.0, %v2086
      %v2088 = vpop.f32.mrf.mxu0
      %2089 = vmatprep.mubr.f32.mxu0 0.0
      %2090 = vmatmul.mubr.f32.gmra.mxu0 %v1457
      %v2091 = vpop.f32.mrf.mxu0
      %v2092 = vadd.f32 0.0, %v2091
      %v2093 = vpop.f32.mrf.mxu0
      %2094 = vmatprep.mubr.f32.mxu0 0.0
      %2095 = vmatmul.mubr.f32.gmra.mxu0 %v1459
      %v2096 = vpop.f32.mrf.mxu0
      %v2097 = vadd.f32 0.0, %v2096
      %v2098 = vpop.f32.mrf.mxu0
      %2099 = vmatprep.mubr.f32.mxu0 0.0
      %2100 = vmatmul.mubr.f32.gmra.mxu0 %v1461
      %v2101 = vpop.f32.mrf.mxu0
      %v2102 = vadd.f32 0.0, %v2101
      %v2103 = vpop.f32.mrf.mxu0
      %2104 = vmatprep.mubr.f32.mxu0 0.0
      %2105 = vmatmul.mubr.f32.gmra.mxu0 %v1463
      %v2106 = vpop.f32.mrf.mxu0
      %v2107 = vadd.f32 0.0, %v2106
      %v2108 = vpop.f32.mrf.mxu0
      %2109 = vmatprep.mubr.f32.mxu0 0.0
      %2110 = vmatmul.mubr.f32.gmra.mxu0 %v1465
      %v2111 = vpop.f32.mrf.mxu0
      %v2112 = vadd.f32 0.0, %v2111
      %v2113 = vpop.f32.mrf.mxu0
      %2114 = vmatprep.mubr.f32.mxu0 0.0
      %2115 = vmatmul.mubr.f32.gmra.mxu0 %v1467
      %v2116 = vpop.f32.mrf.mxu0
      %v2117 = vadd.f32 0.0, %v2116
      %v2118 = vpop.f32.mrf.mxu0
      %2119 = vmatprep.mubr.f32.mxu0 0.0
      %2120 = vmatmul.mubr.f32.gmra.mxu0 %v1469
      %v2121 = vpop.f32.mrf.mxu0
      %v2122 = vadd.f32 0.0, %v2121
      %v2123 = vpop.f32.mrf.mxu0
      %2124 = vmatprep.mubr.f32.mxu0 0.0
      %2125 = vmatmul.mubr.f32.gmra.mxu0 %v1471
      %v2126 = vpop.f32.mrf.mxu0
      %v2127 = vadd.f32 0.0, %v2126
      %v2128 = vpop.f32.mrf.mxu0
      %2129 = vmatprep.mubr.f32.mxu0 0.0
      %2130 = vmatmul.mubr.f32.gmra.mxu0 %v1473
      %v2131 = vpop.f32.mrf.mxu0
      %v2132 = vadd.f32 0.0, %v2131
      %v2133 = vpop.f32.mrf.mxu0
      %2134 = vmatprep.mubr.f32.mxu0 0.0
      %2135 = vmatmul.mubr.f32.gmra.mxu0 %v1993
      %v2136 = vpop.f32.mrf.mxu0
      %v2137 = vadd.f32 0.0, %v2136
      %v2138 = vpop.f32.mrf.mxu0
      %2139 = vmatprep.mubr.f32.mxu0 0.0
      %2140 = vmatmul.mubr.f32.gmra.mxu0 %v1995
      %v2141 = vpop.f32.mrf.mxu0
      %v2142 = vadd.f32 0.0, %v2141
      %v2143 = vpop.f32.mrf.mxu0
      %2144 = vdwg.mxu0
      %v2145 = vadd.f32 %v1970, %v2067
      %v2146 = vadd.f32 %v1971, %v2072
      %v2147 = vadd.f32 %v1972, %v2077
      %v2148 = vadd.f32 %v1973, %v2082
      %v2149 = vadd.f32 %v1974, %v2087
      %v2150 = vadd.f32 %v1975, %v2092
      %v2151 = vadd.f32 %v1976, %v2097
      %v2152 = vadd.f32 %v1977, %v2102
      %v2153 = vadd.f32 %v1978, %v2107
      %v2154 = vadd.f32 %v1979, %v2112
      %v2155 = vadd.f32 %v1980, %v2117
      %v2156 = vadd.f32 %v1981, %v2122
      %v2157 = vadd.f32 %v1982, %v2127
      %v2158 = vadd.f32 %v1983, %v2132
      %v2159 = vadd.f32 %v1984, %v2137
      %v2160 = vadd.f32 %v1985, %v2142
      %s2161 = scalar_lea.vmem %s5, 12
      %v2162 = vld [vmem:[%s2161] sm:$0x3]
      %v2164 = vsel %vm1038, %v967, 0
      %v2166 = vsel %vm1038, %v937, 0
      %v2169 = vsel %vm1071, %v2162, 0
      %2171 = vmatprep.subr.mxu0 0.0
      %2172 = vmatpush1.msra.mxu0 0.0
      %2173 = vmatprep.subr.mxu0 0.0
      %2174 = vmatpush1.msra.mxu0 0.0
      %2175 = vmatprep.subr.mxu0 0.0
      %2176 = vmatpush1.msra.mxu0 0.0
      %2177 = vmatprep.subr.mxu0 0.0
      %2178 = vmatpush1.msra.mxu0 0.0
      %2179 = vmatprep.subr.mxu0 0.0
      %2180 = vmatpush1.msra.mxu0 0.0
      %2181 = vmatprep.subr.mxu0 0.0
      %2182 = vmatpush1.msra.mxu0 0.0
      %2183 = vmatprep.subr.mxu0 0.0
      %2184 = vmatpush1.msra.mxu0 0.0
      %2185 = vmatprep.subr.mxu0 0.0
      %2186 = vmatpush1.msra.mxu0 0.0
      %2187 = vmatprep.subr.mxu0 0.0
      %2188 = vmatpush1.msra.mxu0 0.0
      %2189 = vmatprep.subr.mxu0 0.0
      %2190 = vmatpush1.msra.mxu0 0.0
      %2191 = vmatprep.subr.mxu0 0.0
      %2192 = vmatpush1.msra.mxu0 0.0
      %2193 = vmatprep.subr.mxu0 0.0
      %2194 = vmatpush1.msra.mxu0 0.0
      %2195 = vmatprep.subr.mxu0 0.0
      %2196 = vmatpush1.msra.mxu0 0.0
      %2197 = vmatprep.subr.mxu0 0.0
      %2198 = vmatpush1.msra.mxu0 0.0
      %2199 = vmatprep.subr.mxu0 0.0
      %2200 = vmatpush1.msra.mxu0 0.0
      %2201 = vmatprep.subr.mxu0 0.0
      %2202 = vmatpush1.msra.mxu0 %v2169
      %2203 = vmatprep.subr.mxu0 0.0
      %2204 = vmatpush2.msra.mxu0 0.0
      %2205 = vmatprep.subr.mxu0 0.0
      %2206 = vmatpush2.msra.mxu0 0.0
      %2207 = vmatprep.subr.mxu0 0.0
      %2208 = vmatpush2.msra.mxu0 0.0
      %2209 = vmatprep.subr.mxu0 0.0
      %2210 = vmatpush2.msra.mxu0 0.0
      %2211 = vmatprep.subr.mxu0 0.0
      %2212 = vmatpush2.msra.mxu0 0.0
      %2213 = vmatprep.subr.mxu0 0.0
      %2214 = vmatpush2.msra.mxu0 0.0
      %2215 = vmatprep.subr.mxu0 0.0
      %2216 = vmatpush2.msra.mxu0 0.0
      %2217 = vmatprep.subr.mxu0 0.0
      %2218 = vmatpush2.msra.mxu0 0.0
      %2219 = vmatprep.subr.mxu0 0.0
      %2220 = vmatpush2.msra.mxu0 0.0
      %2221 = vmatprep.subr.mxu0 0.0
      %2222 = vmatpush2.msra.mxu0 0.0
      %2223 = vmatprep.subr.mxu0 0.0
      %2224 = vmatpush2.msra.mxu0 0.0
      %2225 = vmatprep.subr.mxu0 0.0
      %2226 = vmatpush2.msra.mxu0 0.0
      %2227 = vmatprep.subr.mxu0 0.0
      %2228 = vmatpush2.msra.mxu0 0.0
      %2229 = vmatprep.subr.mxu0 0.0
      %2230 = vmatpush2.msra.mxu0 0.0
      %2231 = vmatprep.subr.mxu0 0.0
      %2232 = vmatpush2.msra.mxu0 0.0
      %2233 = vmatprep.subr.mxu0 0.0
      %2234 = vmatpush2.msra.mxu0 0.0
      %2235 = vmatprep.mubr.f32.mxu0 0.0
      %2236 = vmatmul.mubr.f32.gmra.mxu0 %v1228
      %v2237 = vpop.f32.mrf.mxu0
      %v2238 = vadd.f32 0.0, %v2237
      %v2239 = vpop.f32.mrf.mxu0
      %2240 = vmatprep.mubr.f32.mxu0 0.0
      %2241 = vmatmul.mubr.f32.gmra.mxu0 %v1230
      %v2242 = vpop.f32.mrf.mxu0
      %v2243 = vadd.f32 0.0, %v2242
      %v2244 = vpop.f32.mrf.mxu0
      %2245 = vmatprep.mubr.f32.mxu0 0.0
      %2246 = vmatmul.mubr.f32.gmra.mxu0 %v1232
      %v2247 = vpop.f32.mrf.mxu0
      %v2248 = vadd.f32 0.0, %v2247
      %v2249 = vpop.f32.mrf.mxu0
      %2250 = vmatprep.mubr.f32.mxu0 0.0
      %2251 = vmatmul.mubr.f32.gmra.mxu0 %v1234
      %v2252 = vpop.f32.mrf.mxu0
      %v2253 = vadd.f32 0.0, %v2252
      %v2254 = vpop.f32.mrf.mxu0
      %2255 = vmatprep.mubr.f32.mxu0 0.0
      %2256 = vmatmul.mubr.f32.gmra.mxu0 %v1236
      %v2257 = vpop.f32.mrf.mxu0
      %v2258 = vadd.f32 0.0, %v2257
      %v2259 = vpop.f32.mrf.mxu0
      %2260 = vmatprep.mubr.f32.mxu0 0.0
      %2261 = vmatmul.mubr.f32.gmra.mxu0 %v1238
      %v2262 = vpop.f32.mrf.mxu0
      %v2263 = vadd.f32 0.0, %v2262
      %v2264 = vpop.f32.mrf.mxu0
      %2265 = vmatprep.mubr.f32.mxu0 0.0
      %2266 = vmatmul.mubr.f32.gmra.mxu0 %v1240
      %v2267 = vpop.f32.mrf.mxu0
      %v2268 = vadd.f32 0.0, %v2267
      %v2269 = vpop.f32.mrf.mxu0
      %2270 = vmatprep.mubr.f32.mxu0 0.0
      %2271 = vmatmul.mubr.f32.gmra.mxu0 %v1242
      %v2272 = vpop.f32.mrf.mxu0
      %v2273 = vadd.f32 0.0, %v2272
      %v2274 = vpop.f32.mrf.mxu0
      %2275 = vmatprep.mubr.f32.mxu0 0.0
      %2276 = vmatmul.mubr.f32.gmra.mxu0 %v1244
      %v2277 = vpop.f32.mrf.mxu0
      %v2278 = vadd.f32 0.0, %v2277
      %v2279 = vpop.f32.mrf.mxu0
      %2280 = vmatprep.mubr.f32.mxu0 0.0
      %2281 = vmatmul.mubr.f32.gmra.mxu0 %v1246
      %v2282 = vpop.f32.mrf.mxu0
      %v2283 = vadd.f32 0.0, %v2282
      %v2284 = vpop.f32.mrf.mxu0
      %2285 = vmatprep.mubr.f32.mxu0 0.0
      %2286 = vmatmul.mubr.f32.gmra.mxu0 %v1248
      %v2287 = vpop.f32.mrf.mxu0
      %v2288 = vadd.f32 0.0, %v2287
      %v2289 = vpop.f32.mrf.mxu0
      %2290 = vmatprep.mubr.f32.mxu0 0.0
      %2291 = vmatmul.mubr.f32.gmra.mxu0 %v1250
      %v2292 = vpop.f32.mrf.mxu0
      %v2293 = vadd.f32 0.0, %v2292
      %v2294 = vpop.f32.mrf.mxu0
      %2295 = vmatprep.mubr.f32.mxu0 0.0
      %2296 = vmatmul.mubr.f32.gmra.mxu0 %v1642
      %v2297 = vpop.f32.mrf.mxu0
      %v2298 = vadd.f32 0.0, %v2297
      %v2299 = vpop.f32.mrf.mxu0
      %2300 = vmatprep.mubr.f32.mxu0 0.0
      %2301 = vmatmul.mubr.f32.gmra.mxu0 %v1644
      %v2302 = vpop.f32.mrf.mxu0
      %v2303 = vadd.f32 0.0, %v2302
      %v2304 = vpop.f32.mrf.mxu0
      %2305 = vmatprep.mubr.f32.mxu0 0.0
      %2306 = vmatmul.mubr.f32.gmra.mxu0 %v2164
      %v2307 = vpop.f32.mrf.mxu0
      %v2308 = vadd.f32 0.0, %v2307
      %v2309 = vpop.f32.mrf.mxu0
      %2310 = vmatprep.mubr.f32.mxu0 0.0
      %2311 = vmatmul.mubr.f32.gmra.mxu0 %v2166
      %v2312 = vpop.f32.mrf.mxu0
      %v2313 = vadd.f32 0.0, %v2312
      %v2314 = vpop.f32.mrf.mxu0
      %2315 = vdwg.mxu0
      %v2316 = vadd.f32 %v2145, %v2238
      %v2317 = vadd.f32 %v2146, %v2243
      %v2318 = vadd.f32 %v2147, %v2248
      %v2319 = vadd.f32 %v2148, %v2253
      %v2320 = vadd.f32 %v2149, %v2258
      %v2321 = vadd.f32 %v2150, %v2263
      %v2322 = vadd.f32 %v2151, %v2268
      %v2323 = vadd.f32 %v2152, %v2273
      %v2324 = vadd.f32 %v2153, %v2278
      %v2325 = vadd.f32 %v2154, %v2283
      %v2326 = vadd.f32 %v2155, %v2288
      %v2327 = vadd.f32 %v2156, %v2293
      %v2328 = vadd.f32 %v2157, %v2298
      %v2329 = vadd.f32 %v2158, %v2303
      %v2330 = vadd.f32 %v2159, %v2308
      %v2331 = vadd.f32 %v2160, %v2313
      %v2333 = vrot.slane %v967, 1
      %v2334 = vrot.slane %v937, 1
      %v2335 = vsel %vm995, %v2333, %v2334
      %v2336 = vrot.slane %v977, 1
      %v2337 = vsel %vm995, %v2334, %v2336
      %s2338 = scalar_lea.vmem %s5, 14
      %v2339 = vld [vmem:[%s2338] sm:$0x3]
      %v2340 = vsel %vm1038, %v2335, 0
      %v2342 = vsel %vm1038, %v2337, 0
      %v2345 = vsel %vm1071, %v2339, 0
      %2347 = vmatprep.subr.mxu0 0.0
      %2348 = vmatpush1.msra.mxu0 0.0
      %2349 = vmatprep.subr.mxu0 0.0
      %2350 = vmatpush1.msra.mxu0 0.0
      %2351 = vmatprep.subr.mxu0 0.0
      %2352 = vmatpush1.msra.mxu0 0.0
      %2353 = vmatprep.subr.mxu0 0.0
      %2354 = vmatpush1.msra.mxu0 0.0
      %2355 = vmatprep.subr.mxu0 0.0
      %2356 = vmatpush1.msra.mxu0 0.0
      %2357 = vmatprep.subr.mxu0 0.0
      %2358 = vmatpush1.msra.mxu0 0.0
      %2359 = vmatprep.subr.mxu0 0.0
      %2360 = vmatpush1.msra.mxu0 0.0
      %2361 = vmatprep.subr.mxu0 0.0
      %2362 = vmatpush1.msra.mxu0 0.0
      %2363 = vmatprep.subr.mxu0 0.0
      %2364 = vmatpush1.msra.mxu0 0.0
      %2365 = vmatprep.subr.mxu0 0.0
      %2366 = vmatpush1.msra.mxu0 0.0
      %2367 = vmatprep.subr.mxu0 0.0
      %2368 = vmatpush1.msra.mxu0 0.0
      %2369 = vmatprep.subr.mxu0 0.0
      %2370 = vmatpush1.msra.mxu0 0.0
      %2371 = vmatprep.subr.mxu0 0.0
      %2372 = vmatpush1.msra.mxu0 0.0
      %2373 = vmatprep.subr.mxu0 0.0
      %2374 = vmatpush1.msra.mxu0 0.0
      %2375 = vmatprep.subr.mxu0 0.0
      %2376 = vmatpush1.msra.mxu0 0.0
      %2377 = vmatprep.subr.mxu0 0.0
      %2378 = vmatpush1.msra.mxu0 %v2345
      %2379 = vmatprep.subr.mxu0 0.0
      %2380 = vmatpush2.msra.mxu0 0.0
      %2381 = vmatprep.subr.mxu0 0.0
      %2382 = vmatpush2.msra.mxu0 0.0
      %2383 = vmatprep.subr.mxu0 0.0
      %2384 = vmatpush2.msra.mxu0 0.0
      %2385 = vmatprep.subr.mxu0 0.0
      %2386 = vmatpush2.msra.mxu0 0.0
      %2387 = vmatprep.subr.mxu0 0.0
      %2388 = vmatpush2.msra.mxu0 0.0
      %2389 = vmatprep.subr.mxu0 0.0
      %2390 = vmatpush2.msra.mxu0 0.0
      %2391 = vmatprep.subr.mxu0 0.0
      %2392 = vmatpush2.msra.mxu0 0.0
      %2393 = vmatprep.subr.mxu0 0.0
      %2394 = vmatpush2.msra.mxu0 0.0
      %2395 = vmatprep.subr.mxu0 0.0
      %2396 = vmatpush2.msra.mxu0 0.0
      %2397 = vmatprep.subr.mxu0 0.0
      %2398 = vmatpush2.msra.mxu0 0.0
      %2399 = vmatprep.subr.mxu0 0.0
      %2400 = vmatpush2.msra.mxu0 0.0
      %2401 = vmatprep.subr.mxu0 0.0
      %2402 = vmatpush2.msra.mxu0 0.0
      %2403 = vmatprep.subr.mxu0 0.0
      %2404 = vmatpush2.msra.mxu0 0.0
      %2405 = vmatprep.subr.mxu0 0.0
      %2406 = vmatpush2.msra.mxu0 0.0
      %2407 = vmatprep.subr.mxu0 0.0
      %2408 = vmatpush2.msra.mxu0 0.0
      %2409 = vmatprep.subr.mxu0 0.0
      %2410 = vmatpush2.msra.mxu0 0.0
      %2411 = vmatprep.mubr.f32.mxu0 0.0
      %2412 = vmatmul.mubr.f32.gmra.mxu0 %v1047
      %v2413 = vpop.f32.mrf.mxu0
      %v2414 = vadd.f32 0.0, %v2413
      %v2415 = vpop.f32.mrf.mxu0
      %2416 = vmatprep.mubr.f32.mxu0 0.0
      %2417 = vmatmul.mubr.f32.gmra.mxu0 %v1049
      %v2418 = vpop.f32.mrf.mxu0
      %v2419 = vadd.f32 0.0, %v2418
      %v2420 = vpop.f32.mrf.mxu0
      %2421 = vmatprep.mubr.f32.mxu0 0.0
      %2422 = vmatmul.mubr.f32.gmra.mxu0 %v1051
      %v2423 = vpop.f32.mrf.mxu0
      %v2424 = vadd.f32 0.0, %v2423
      %v2425 = vpop.f32.mrf.mxu0
      %2426 = vmatprep.mubr.f32.mxu0 0.0
      %2427 = vmatmul.mubr.f32.gmra.mxu0 %v1053
      %v2428 = vpop.f32.mrf.mxu0
      %v2429 = vadd.f32 0.0, %v2428
      %v2430 = vpop.f32.mrf.mxu0
      %2431 = vmatprep.mubr.f32.mxu0 0.0
      %2432 = vmatmul.mubr.f32.gmra.mxu0 %v1055
      %v2433 = vpop.f32.mrf.mxu0
      %v2434 = vadd.f32 0.0, %v2433
      %v2435 = vpop.f32.mrf.mxu0
      %2436 = vmatprep.mubr.f32.mxu0 0.0
      %2437 = vmatmul.mubr.f32.gmra.mxu0 %v1057
      %v2438 = vpop.f32.mrf.mxu0
      %v2439 = vadd.f32 0.0, %v2438
      %v2440 = vpop.f32.mrf.mxu0
      %2441 = vmatprep.mubr.f32.mxu0 0.0
      %2442 = vmatmul.mubr.f32.gmra.mxu0 %v1059
      %v2443 = vpop.f32.mrf.mxu0
      %v2444 = vadd.f32 0.0, %v2443
      %v2445 = vpop.f32.mrf.mxu0
      %2446 = vmatprep.mubr.f32.mxu0 0.0
      %2447 = vmatmul.mubr.f32.gmra.mxu0 %v1061
      %v2448 = vpop.f32.mrf.mxu0
      %v2449 = vadd.f32 0.0, %v2448
      %v2450 = vpop.f32.mrf.mxu0
      %2451 = vmatprep.mubr.f32.mxu0 0.0
      %2452 = vmatmul.mubr.f32.gmra.mxu0 %v1063
      %v2453 = vpop.f32.mrf.mxu0
      %v2454 = vadd.f32 0.0, %v2453
      %v2455 = vpop.f32.mrf.mxu0
      %2456 = vmatprep.mubr.f32.mxu0 0.0
      %2457 = vmatmul.mubr.f32.gmra.mxu0 %v1065
      %v2458 = vpop.f32.mrf.mxu0
      %v2459 = vadd.f32 0.0, %v2458
      %v2460 = vpop.f32.mrf.mxu0
      %2461 = vmatprep.mubr.f32.mxu0 0.0
      %2462 = vmatmul.mubr.f32.gmra.mxu0 %v1067
      %v2463 = vpop.f32.mrf.mxu0
      %v2464 = vadd.f32 0.0, %v2463
      %v2465 = vpop.f32.mrf.mxu0
      %2466 = vmatprep.mubr.f32.mxu0 0.0
      %2467 = vmatmul.mubr.f32.gmra.mxu0 %v1069
      %v2468 = vpop.f32.mrf.mxu0
      %v2469 = vadd.f32 0.0, %v2468
      %v2470 = vpop.f32.mrf.mxu0
      %2471 = vmatprep.mubr.f32.mxu0 0.0
      %2472 = vmatmul.mubr.f32.gmra.mxu0 %v1818
      %v2473 = vpop.f32.mrf.mxu0
      %v2474 = vadd.f32 0.0, %v2473
      %v2475 = vpop.f32.mrf.mxu0
      %2476 = vmatprep.mubr.f32.mxu0 0.0
      %2477 = vmatmul.mubr.f32.gmra.mxu0 %v1820
      %v2478 = vpop.f32.mrf.mxu0
      %v2479 = vadd.f32 0.0, %v2478
      %v2480 = vpop.f32.mrf.mxu0
      %2481 = vmatprep.mubr.f32.mxu0 0.0
      %2482 = vmatmul.mubr.f32.gmra.mxu0 %v2340
      %v2483 = vpop.f32.mrf.mxu0
      %v2484 = vadd.f32 0.0, %v2483
      %v2485 = vpop.f32.mrf.mxu0
      %2486 = vmatprep.mubr.f32.mxu0 0.0
      %2487 = vmatmul.mubr.f32.gmra.mxu0 %v2342
      %v2488 = vpop.f32.mrf.mxu0
      %v2489 = vadd.f32 0.0, %v2488
      %v2490 = vpop.f32.mrf.mxu0
      %2491 = vdwg.mxu0
      %v2492 = vadd.f32 %v2316, %v2414
      %v2493 = vadd.f32 %v2317, %v2419
      %v2494 = vadd.f32 %v2318, %v2424
      %v2495 = vadd.f32 %v2319, %v2429
      %v2496 = vadd.f32 %v2320, %v2434
      %v2497 = vadd.f32 %v2321, %v2439
      %v2498 = vadd.f32 %v2322, %v2444
      %v2499 = vadd.f32 %v2323, %v2449
      %v2500 = vadd.f32 %v2324, %v2454
      %v2501 = vadd.f32 %v2325, %v2459
      %v2502 = vadd.f32 %v2326, %v2464
      %v2503 = vadd.f32 %v2327, %v2469
      %v2504 = vadd.f32 %v2328, %v2474
      %v2505 = vadd.f32 %v2329, %v2479
      %v2506 = vadd.f32 %v2330, %v2484
      %v2507 = vadd.f32 %v2331, %v2489
      %v2508 = vrot.slane %v967, 2
      %v2509 = vrot.slane %v937, 2
      %v2510 = vsel %vm1400, %v2508, %v2509
      %v2511 = vrot.slane %v977, 2
      %v2512 = vsel %vm1400, %v2509, %v2511
      %s2513 = scalar_lea.vmem %s5, 16
      %v2514 = vld [vmem:[%s2513] sm:$0x3]
      %v2515 = vsel %vm1038, %v2510, 0
      %v2517 = vsel %vm1038, %v2512, 0
      %v2520 = vsel %vm1071, %v2514, 0
      %2522 = vmatprep.subr.mxu0 0.0
      %2523 = vmatpush1.msra.mxu0 0.0
      %2524 = vmatprep.subr.mxu0 0.0
      %2525 = vmatpush1.msra.mxu0 0.0
      %2526 = vmatprep.subr.mxu0 0.0
      %2527 = vmatpush1.msra.mxu0 0.0
      %2528 = vmatprep.subr.mxu0 0.0
      %2529 = vmatpush1.msra.mxu0 0.0
      %2530 = vmatprep.subr.mxu0 0.0
      %2531 = vmatpush1.msra.mxu0 0.0
      %2532 = vmatprep.subr.mxu0 0.0
      %2533 = vmatpush1.msra.mxu0 0.0
      %2534 = vmatprep.subr.mxu0 0.0
      %2535 = vmatpush1.msra.mxu0 0.0
      %2536 = vmatprep.subr.mxu0 0.0
      %2537 = vmatpush1.msra.mxu0 0.0
      %2538 = vmatprep.subr.mxu0 0.0
      %2539 = vmatpush1.msra.mxu0 0.0
      %2540 = vmatprep.subr.mxu0 0.0
      %2541 = vmatpush1.msra.mxu0 0.0
      %2542 = vmatprep.subr.mxu0 0.0
      %2543 = vmatpush1.msra.mxu0 0.0
      %2544 = vmatprep.subr.mxu0 0.0
      %2545 = vmatpush1.msra.mxu0 0.0
      %2546 = vmatprep.subr.mxu0 0.0
      %2547 = vmatpush1.msra.mxu0 0.0
      %2548 = vmatprep.subr.mxu0 0.0
      %2549 = vmatpush1.msra.mxu0 0.0
      %2550 = vmatprep.subr.mxu0 0.0
      %2551 = vmatpush1.msra.mxu0 0.0
      %2552 = vmatprep.subr.mxu0 0.0
      %2553 = vmatpush1.msra.mxu0 %v2520
      %2554 = vmatprep.subr.mxu0 0.0
      %2555 = vmatpush2.msra.mxu0 0.0
      %2556 = vmatprep.subr.mxu0 0.0
      %2557 = vmatpush2.msra.mxu0 0.0
      %2558 = vmatprep.subr.mxu0 0.0
      %2559 = vmatpush2.msra.mxu0 0.0
      %2560 = vmatprep.subr.mxu0 0.0
      %2561 = vmatpush2.msra.mxu0 0.0
      %2562 = vmatprep.subr.mxu0 0.0
      %2563 = vmatpush2.msra.mxu0 0.0
      %2564 = vmatprep.subr.mxu0 0.0
      %2565 = vmatpush2.msra.mxu0 0.0
      %2566 = vmatprep.subr.mxu0 0.0
      %2567 = vmatpush2.msra.mxu0 0.0
      %2568 = vmatprep.subr.mxu0 0.0
      %2569 = vmatpush2.msra.mxu0 0.0
      %2570 = vmatprep.subr.mxu0 0.0
      %2571 = vmatpush2.msra.mxu0 0.0
      %2572 = vmatprep.subr.mxu0 0.0
      %2573 = vmatpush2.msra.mxu0 0.0
      %2574 = vmatprep.subr.mxu0 0.0
      %2575 = vmatpush2.msra.mxu0 0.0
      %2576 = vmatprep.subr.mxu0 0.0
      %2577 = vmatpush2.msra.mxu0 0.0
      %2578 = vmatprep.subr.mxu0 0.0
      %2579 = vmatpush2.msra.mxu0 0.0
      %2580 = vmatprep.subr.mxu0 0.0
      %2581 = vmatpush2.msra.mxu0 0.0
      %2582 = vmatprep.subr.mxu0 0.0
      %2583 = vmatpush2.msra.mxu0 0.0
      %2584 = vmatprep.subr.mxu0 0.0
      %2585 = vmatpush2.msra.mxu0 0.0
      %2586 = vmatprep.mubr.f32.mxu0 0.0
      %2587 = vmatmul.mubr.f32.gmra.mxu0 %v1451
      %v2588 = vpop.f32.mrf.mxu0
      %v2589 = vadd.f32 0.0, %v2588
      %v2590 = vpop.f32.mrf.mxu0
      %2591 = vmatprep.mubr.f32.mxu0 0.0
      %2592 = vmatmul.mubr.f32.gmra.mxu0 %v1453
      %v2593 = vpop.f32.mrf.mxu0
      %v2594 = vadd.f32 0.0, %v2593
      %v2595 = vpop.f32.mrf.mxu0
      %2596 = vmatprep.mubr.f32.mxu0 0.0
      %2597 = vmatmul.mubr.f32.gmra.mxu0 %v1455
      %v2598 = vpop.f32.mrf.mxu0
      %v2599 = vadd.f32 0.0, %v2598
      %v2600 = vpop.f32.mrf.mxu0
      %2601 = vmatprep.mubr.f32.mxu0 0.0
      %2602 = vmatmul.mubr.f32.gmra.mxu0 %v1457
      %v2603 = vpop.f32.mrf.mxu0
      %v2604 = vadd.f32 0.0, %v2603
      %v2605 = vpop.f32.mrf.mxu0
      %2606 = vmatprep.mubr.f32.mxu0 0.0
      %2607 = vmatmul.mubr.f32.gmra.mxu0 %v1459
      %v2608 = vpop.f32.mrf.mxu0
      %v2609 = vadd.f32 0.0, %v2608
      %v2610 = vpop.f32.mrf.mxu0
      %2611 = vmatprep.mubr.f32.mxu0 0.0
      %2612 = vmatmul.mubr.f32.gmra.mxu0 %v1461
      %v2613 = vpop.f32.mrf.mxu0
      %v2614 = vadd.f32 0.0, %v2613
      %v2615 = vpop.f32.mrf.mxu0
      %2616 = vmatprep.mubr.f32.mxu0 0.0
      %2617 = vmatmul.mubr.f32.gmra.mxu0 %v1463
      %v2618 = vpop.f32.mrf.mxu0
      %v2619 = vadd.f32 0.0, %v2618
      %v2620 = vpop.f32.mrf.mxu0
      %2621 = vmatprep.mubr.f32.mxu0 0.0
      %2622 = vmatmul.mubr.f32.gmra.mxu0 %v1465
      %v2623 = vpop.f32.mrf.mxu0
      %v2624 = vadd.f32 0.0, %v2623
      %v2625 = vpop.f32.mrf.mxu0
      %2626 = vmatprep.mubr.f32.mxu0 0.0
      %2627 = vmatmul.mubr.f32.gmra.mxu0 %v1467
      %v2628 = vpop.f32.mrf.mxu0
      %v2629 = vadd.f32 0.0, %v2628
      %v2630 = vpop.f32.mrf.mxu0
      %2631 = vmatprep.mubr.f32.mxu0 0.0
      %2632 = vmatmul.mubr.f32.gmra.mxu0 %v1469
      %v2633 = vpop.f32.mrf.mxu0
      %v2634 = vadd.f32 0.0, %v2633
      %v2635 = vpop.f32.mrf.mxu0
      %2636 = vmatprep.mubr.f32.mxu0 0.0
      %2637 = vmatmul.mubr.f32.gmra.mxu0 %v1471
      %v2638 = vpop.f32.mrf.mxu0
      %v2639 = vadd.f32 0.0, %v2638
      %v2640 = vpop.f32.mrf.mxu0
      %2641 = vmatprep.mubr.f32.mxu0 0.0
      %2642 = vmatmul.mubr.f32.gmra.mxu0 %v1473
      %v2643 = vpop.f32.mrf.mxu0
      %v2644 = vadd.f32 0.0, %v2643
      %v2645 = vpop.f32.mrf.mxu0
      %2646 = vmatprep.mubr.f32.mxu0 0.0
      %2647 = vmatmul.mubr.f32.gmra.mxu0 %v1993
      %v2648 = vpop.f32.mrf.mxu0
      %v2649 = vadd.f32 0.0, %v2648
      %v2650 = vpop.f32.mrf.mxu0
      %2651 = vmatprep.mubr.f32.mxu0 0.0
      %2652 = vmatmul.mubr.f32.gmra.mxu0 %v1995
      %v2653 = vpop.f32.mrf.mxu0
      %v2654 = vadd.f32 0.0, %v2653
      %v2655 = vpop.f32.mrf.mxu0
      %2656 = vmatprep.mubr.f32.mxu0 0.0
      %2657 = vmatmul.mubr.f32.gmra.mxu0 %v2515
      %v2658 = vpop.f32.mrf.mxu0
      %v2659 = vadd.f32 0.0, %v2658
      %v2660 = vpop.f32.mrf.mxu0
      %2661 = vmatprep.mubr.f32.mxu0 0.0
      %2662 = vmatmul.mubr.f32.gmra.mxu0 %v2517
      %v2663 = vpop.f32.mrf.mxu0
      %v2664 = vadd.f32 0.0, %v2663
      %v2665 = vpop.f32.mrf.mxu0
      %2666 = vdwg.mxu0
      %v2667 = vadd.f32 %v2492, %v2589
      %v2668 = vadd.f32 %v2493, %v2594
      %v2669 = vadd.f32 %v2494, %v2599
      %v2670 = vadd.f32 %v2495, %v2604
      %v2671 = vadd.f32 %v2496, %v2609
      %v2672 = vadd.f32 %v2497, %v2614
      %v2673 = vadd.f32 %v2498, %v2619
      %v2674 = vadd.f32 %v2499, %v2624
      %v2675 = vadd.f32 %v2500, %v2629
      %v2676 = vadd.f32 %v2501, %v2634
      %v2677 = vadd.f32 %v2502, %v2639
      %v2678 = vadd.f32 %v2503, %v2644
      %v2679 = vadd.f32 %v2504, %v2649
      %v2680 = vadd.f32 %v2505, %v2654
      %v2681 = vadd.f32 %v2506, %v2659
      %v2682 = vadd.f32 %v2507, %v2664
      %v2683 = vld [vmem:[%s6] sm:$0x1]
      %v2685 = vlaneseq
      %v2686 = vshrl.u32 %v2685, 7
      %v2687 = vsub.s32 0, %v2686
      %v2688 = vrot.slane %v2683, %v2687
      %v2690 = vadd.f32 %v2667, %v2688
      %v2691 = vadd.f32 %v2668, %v2688
      %v2692 = vadd.f32 %v2669, %v2688
      %v2693 = vadd.f32 %v2670, %v2688
      %v2694 = vadd.f32 %v2671, %v2688
      %v2695 = vadd.f32 %v2672, %v2688
      %v2696 = vadd.f32 %v2673, %v2688
      %v2697 = vadd.f32 %v2674, %v2688
      %v2698 = vadd.f32 %v2675, %v2688
      %v2699 = vadd.f32 %v2676, %v2688
      %v2700 = vadd.f32 %v2677, %v2688
      %v2701 = vadd.f32 %v2678, %v2688
      %v2702 = vadd.f32 %v2679, %v2688
      %v2703 = vadd.f32 %v2680, %v2688
      %v2704 = vadd.f32 %v2681, %v2688
      %v2705 = vadd.f32 %v2682, %v2688
      %v2706 = vmul.f32 %v2690, 0.1
      %v2707 = vmul.f32 %v2691, 0.1
      %v2708 = vmul.f32 %v2692, 0.1
      %v2709 = vmul.f32 %v2693, 0.1
      %v2710 = vmul.f32 %v2694, 0.1
      %v2711 = vmul.f32 %v2695, 0.1
      %v2712 = vmul.f32 %v2696, 0.1
      %v2713 = vmul.f32 %v2697, 0.1
      %v2714 = vmul.f32 %v2698, 0.1
      %v2715 = vmul.f32 %v2699, 0.1
      %v2716 = vmul.f32 %v2700, 0.1
      %v2717 = vmul.f32 %v2701, 0.1
      %v2718 = vmul.f32 %v2702, 0.1
      %v2719 = vmul.f32 %v2703, 0.1
      %v2720 = vmul.f32 %v2704, 0.1
      %v2721 = vmul.f32 %v2705, 0.1
      %v2722 = vmax.f32 %v2690, %v2706
      %v2723 = vmax.f32 %v2691, %v2707
      %v2724 = vmax.f32 %v2692, %v2708
      %v2725 = vmax.f32 %v2693, %v2709
      %v2726 = vmax.f32 %v2694, %v2710
      %v2727 = vmax.f32 %v2695, %v2711
      %v2728 = vmax.f32 %v2696, %v2712
      %v2729 = vmax.f32 %v2697, %v2713
      %v2730 = vmax.f32 %v2698, %v2714
      %v2731 = vmax.f32 %v2699, %v2715
      %v2732 = vmax.f32 %v2700, %v2716
      %v2733 = vmax.f32 %v2701, %v2717
      %v2734 = vmax.f32 %v2702, %v2718
      %v2735 = vmax.f32 %v2703, %v2719
      %v2736 = vmax.f32 %v2704, %v2720
      %v2737 = vmax.f32 %v2705, %v2721
      %v2738 = vadd.f32 %v2722, %v449
      %v2739 = vadd.f32 %v2723, %v450
      %v2740 = vadd.f32 %v2724, %v451
      %v2741 = vadd.f32 %v2725, %v452
      %v2742 = vadd.f32 %v2726, %v453
      %v2743 = vadd.f32 %v2727, %v454
      %v2744 = vadd.f32 %v2728, %v455
      %v2745 = vadd.f32 %v2729, %v456
      %v2746 = vadd.f32 %v2730, %v457
      %v2747 = vadd.f32 %v2731, %v458
      %v2748 = vadd.f32 %v2732, %v459
      %v2749 = vadd.f32 %v2733, %v460
      %v2750 = vadd.f32 %v2734, %v461
      %v2751 = vadd.f32 %v2735, %v462
      %v2752 = vadd.f32 %v2736, %v463
      %v2753 = vadd.f32 %v2737, %v464
      %2754 = vst.msk [vmem:[%s445] sm:$0xff] %vm471, %v2738
      %2755 = vst.msk [vmem:[%s445 + $0x8] sm:$0xff] %vm471, %v2739
      %2756 = vst.msk [vmem:[%s445 + $0x10] sm:$0xff] %vm471, %v2740
      %2757 = vst.msk [vmem:[%s445 + $0x18] sm:$0xff] %vm471, %v2741
      %2758 = vst.msk [vmem:[%s445 + $0x20] sm:$0xff] %vm471, %v2742
      %2759 = vst.msk [vmem:[%s445 + $0x28] sm:$0xff] %vm471, %v2743
      %2760 = vst.msk [vmem:[%s445 + $0x30] sm:$0xff] %vm471, %v2744
      %2761 = vst.msk [vmem:[%s445 + $0x38] sm:$0xff] %vm471, %v2745
      %2762 = vst.msk [vmem:[%s445 + $0x40] sm:$0xff] %vm471, %v2746
      %2763 = vst.msk [vmem:[%s445 + $0x48] sm:$0xff] %vm471, %v2747
      %2764 = vst.msk [vmem:[%s445 + $0x50] sm:$0xff] %vm471, %v2748
      %2765 = vst.msk [vmem:[%s445 + $0x58] sm:$0xff] %vm471, %v2749
      %2766 = vst.msk [vmem:[%s445 + $0x60] sm:$0xff] %vm471, %v2750
      %2767 = vst.msk [vmem:[%s445 + $0x68] sm:$0xff] %vm471, %v2751
      %2768 = vst.msk [vmem:[%s445 + $0x70] sm:$0xff] %vm471, %v2752
      %2769 = vst.msk [vmem:[%s445 + $0x78] sm:$0xff] %vm471, %v2753
      %s2770 = smul.u32 8, %s23
      %p2771 = scmp.lt.s32.totalorder %s22, 1
      %s2772 = scalar_select %p2771, %s22, 1
      %p2773 = scmp.lt.s32.totalorder %s2770, 15
      %s2774 = scalar_select %p2773, %s2770, 15
      %s2775 = smul.addr %s2774, 2
      %s2776 = smul.addr %s2772, 32
      %s2777 = sadd.s32 %s2775, %s2776
      %s2778 = smul.addr %s2777, 8
      %s2779 = scalar_lea.vmem %s7, %s2778
      // Predicated region
      $region49: #{tpu_custom_call.1} parent=47 // pred_check
        %p2780 = pneg %p234
      $region50: #{tpu_custom_call.1} parent=47 // pred_check_branch
        %2782 = sbr.rel (%p2780) target = $region52
      $region51: #{tpu_custom_call.1} parent=47 // pred_region
        %s2783 = smul.u32 8, %s23
      $region52: #{tpu_custom_call.1} parent=47 // pred_fallthru
        _
    $region48: #{tpu_custom_call.1} parent=5 // pred_fallthru
      _
    %p2784 = scmp.le.s32.totalorder 2, %s13
    // Predicated region
    $region53: #{tpu_custom_call.1} parent=5 // pred_check
      %p2785 = pneg %p2784
    $region54: #{tpu_custom_call.1} parent=5 // pred_check_branch
      %2787 = sbr.rel (%p2785) target = $region56
    $region55: #{tpu_custom_call.1} parent=5 // pred_region
      %s2788 = ssub.s32 %s13, 2
      // Predicated region
      $region57: #{tpu_custom_call.1} parent=55 // pred_check
        %p2789 = pneg %p240
      $region58: #{tpu_custom_call.1} parent=55 // pred_check_branch
        %2791 = sbr.rel (%p2789) target = $region60
      $region59: #{tpu_custom_call.1} parent=55 // pred_region
        %s2792 = smul.u32 8, %s25
        %p2793 = scmp.lt.s32.totalorder %s24, 1
        %s2794 = scalar_select %p2793, %s24, 1
        %p2795 = scmp.lt.s32.totalorder %s2792, 15
        %s2796 = scalar_select %p2795, %s2792, 15
        %s2797 = smul.addr %s2796, 2
        %s2798 = smul.addr %s2794, 32
        %s2799 = sadd.s32 %s2797, %s2798
        %s2800 = smul.addr %s2799, 8
        %s2801 = scalar_lea.vmem %s7, %s2800
      $region60: #{tpu_custom_call.1} parent=55 // pred_fallthru
        _
    $region56: #{tpu_custom_call.1} parent=5 // pred_fallthru
      _
  $region6: #{tpu_custom_call.1} parent=0 // loop_footer
    %s17 = sadd.s32 1, %s13
  $region7: #{tpu_custom_call.1} parent=0 // loop_footer_branch
    %12 = sbr.rel target = $region3
  $region8: #{tpu_custom_call.1} parent=0 // loop_exit
    _

</llo_original>
